<compile_context>
chip_gen: v7x
topology: tpu7x:2x2x1
jax: 0.10.0
libtpu: 0.0.40
codegen_flags: <defaults>
</compile_context>

<pallas_src>
import functools

import jax
import jax.numpy as jnp
import numpy as np
from jax.experimental import pallas as pl
from jax.experimental.pallas import tpu as pltpu

PAD = 128  # lane width of the packed weight slabs


def _round_up(x, m):
    return ((x + m - 1) // m) * m


def _make_banknn_kernel(num_layers, num_subtiles, tb_sub, n_out_lanes):
    def kernel(x_ref, w_ref, b_ref, o_ref):
        cdt = w_ref.dtype  # matmul operand dtype (bf16 default, f32 for validation)
        # Independent batch sub-tiles -> interleaved matmul/tanh chains so the
        # LLO scheduler can overlap MXU drain of one chain with EUP tanh of the
        # other (a single strict dependency chain stalls on result latency).
        hs = [x_ref[pl.ds(s * tb_sub, tb_sub), :] for s in range(num_subtiles)]
        for l in range(num_layers - 1):          # fully unrolled, static slices
            w = w_ref[l]                          # [PAD, PAD] block-diagonal
            b = b_ref[l]                          # [1, PAD]   (f32)
            hs = [
                jnp.tanh(
                    jnp.dot(h.astype(cdt), w, preferred_element_type=jnp.float32) + b
                )
                for h in hs
            ]
        # Last layer maps packed blocks to compact output lanes [P * out_dim].
        wl = w_ref[num_layers - 1][:, :n_out_lanes]
        bl = b_ref[num_layers - 1][:, :n_out_lanes]
        for s in range(num_subtiles):
            z = jnp.dot(hs[s].astype(cdt), wl, preferred_element_type=jnp.float32) + bl
            o_ref[pl.ds(s * tb_sub, tb_sub), :] = jax.nn.sigmoid(jnp.tanh(z)).astype(
                o_ref.dtype
            )

    return kernel


def pack_params(weights, biases, *, dtype=jnp.bfloat16):
    """weights[i]: [in_i, out_i]; biases[i]: [out_i].

    Returns (wslab [L,128,128], bslab [L,1,128], block_width).

    Each layer's weight is replicated P = 128 // block_width times along the
    block diagonal, so P samples are processed per 128-lane row.  The last
    layer instead maps block p's inputs to compact lanes [p*out_dim,(p+1)*out_dim)
    so the kernel output is only P*out_dim lanes wide.  Zero padding inside a
    block is semantics-preserving: padded lanes stay tanh(0)=0 through every
    layer and the next layer's padded weight rows are zero.
    """
    L = len(weights)
    max_dim = max(max(w.shape) for w in weights)
    assert max_dim <= PAD, "TODO(synk): add K/N-tiling for layer dims > 128"
    block_width = next(d for d in (8, 16, 32, 64, 128) if d >= max_dim)
    P = PAD // block_width
    out_dim = weights[-1].shape[1]

    wslab = np.zeros((L, PAD, PAD), np.float32)
    bslab = np.zeros((L, 1, PAD), np.float32)
    for i, (w, b) in enumerate(zip(weights, biases)):
        w = np.asarray(w, np.float32)
        b = np.asarray(b, np.float32).reshape(-1)
        din, dout = w.shape
        for p in range(P):
            r0 = p * block_width
            c0 = p * out_dim if i == L - 1 else p * block_width
            wslab[i, r0:r0 + din, c0:c0 + dout] = w
            bslab[i, 0, c0:c0 + dout] = b
    return jnp.asarray(wslab, dtype), jnp.asarray(bslab, jnp.float32), block_width


@functools.partial(
    jax.jit, static_argnames=("out_dim", "block_width", "block_batch", "num_subtiles")
)
def banknn_forward(x, wslab, bslab, *, out_dim, block_width, block_batch=1024,
                   num_subtiles=2):
    """x: [B, F] f32.  wslab: [L,128,128] (bf16 or f32).  bslab: [L,1,128] f32."""
    B, F = x.shape
    L = wslab.shape[0]
    P = PAD // block_width
    assert F <= block_width and out_dim <= block_width
    n_out_lanes = P * out_dim

    # Packed-row tiling: each 128-lane row carries P samples.
    rows = pl.cdiv(B, P)
    rows16 = _round_up(rows, 16)
    TB = min(_round_up(block_batch, 16), rows16)
    if TB >= rows16 and rows16 >= 32:
        # Keep >= 2 grid steps when there is enough work so the "parallel" axis
        # can shard across v7x's two TensorCores (no effect on v5e/v6e).
        TB = _round_up(pl.cdiv(rows16, 2), 16)
    num_tiles = pl.cdiv(rows16, TB)
    Rp = num_tiles * TB

    ns = num_subtiles
    while ns > 1 and TB % (8 * ns) != 0:   # sub-tiles must stay 8-row aligned
        ns //= 2

    # Pack: pad features only to the block width (not 128), P samples per row.
    xp = jnp.zeros((Rp * P, block_width), jnp.float32).at[:B, :F].set(x)
    xp = xp.reshape(Rp, PAD)

    kernel = _make_banknn_kernel(L, ns, TB // ns, n_out_lanes)

    cost = pl.CostEstimate(
        flops=2 * L * Rp * PAD * PAD,
        transcendentals=(L * PAD + n_out_lanes) * Rp,
        bytes_accessed=(
            Rp * PAD * 4
            + Rp * n_out_lanes * 4
            + wslab.size * wslab.dtype.itemsize
            + bslab.size * 4
        ),
    )

    out_packed = pl.pallas_call(
        kernel,
        out_shape=jax.ShapeDtypeStruct((Rp, n_out_lanes), jnp.float32),
        grid=(num_tiles,),
        in_specs=[
            pl.BlockSpec((TB, PAD), lambda i: (i, 0)),          # packed x row tile
            pl.BlockSpec((L, PAD, PAD), lambda i: (0, 0, 0)),   # weights: resident
            pl.BlockSpec((L, 1, PAD), lambda i: (0, 0, 0)),     # biases: resident
        ],
        out_specs=pl.BlockSpec((TB, n_out_lanes), lambda i: (i, 0)),
        compiler_params=pltpu.CompilerParams(
            dimension_semantics=("parallel",),                   # megacore on v7x
        ),
        cost_estimate=cost,
    )(xp, wslab, bslab)

    # Unpack: row r, lanes [p*out_dim, (p+1)*out_dim) -> sample r*P + p.
    return out_packed.reshape(Rp * P, out_dim)[:B]


def init_banknn_params(key, num_features, hidden_layer_width, output_dim):
    """PyTorch nn.Linear default init: U(-1/sqrt(fan_in), 1/sqrt(fan_in)).
    Weights stored as [in, out] (transposed torch layout) for x @ W."""
    in_dims = [num_features] + [hidden_layer_width] * 8
    out_dims = [hidden_layer_width] * 8 + [output_dim]
    weights, biases = [], []
    for d_in, d_out in zip(in_dims, out_dims):
        kw, kb, key = jax.random.split(key, 3)
        bound = 1.0 / (d_in ** 0.5)
        weights.append(jax.random.uniform(kw, (d_in, d_out), jnp.float32, -bound, bound))
        biases.append(jax.random.uniform(kb, (d_out,), jnp.float32, -bound, bound))
    return weights, biases


if __name__ == "__main__":
    num_features = 16
    hidden_layer_width = 32
    output_dim = 2

    key = jax.random.PRNGKey(0)
    kx, kx2, kp = jax.random.split(key, 3)
    weights, biases = init_banknn_params(kp, num_features, hidden_layer_width, output_dim)

    def reference(xin):
        h = xin
        for w, b in zip(weights, biases):
            h = jnp.tanh(h @ w + b[None, :])
        return jax.nn.sigmoid(h)

    # --- exact-precision validation path (f32 weights, tiny batch) ----------
    x = jax.random.normal(kx, (8, num_features), jnp.float32)
    wslab32, bslab32, bw = pack_params(weights, biases, dtype=jnp.float32)
    out32 = banknn_forward(x, wslab32, bslab32, out_dim=output_dim, block_width=bw)
    out32 = jax.block_until_ready(out32)
    assert out32.shape == (8, output_dim)
    assert jnp.allclose(out32, reference(x), atol=1e-5, rtol=1e-5)

    # --- default perf path (bf16 MXU operands), odd batch -> multi-tile grid -
    wslab, bslab, bw = pack_params(weights, biases)            # bf16 weights
    x2 = jax.random.normal(kx2, (333, num_features), jnp.float32)
    out = banknn_forward(x2, wslab, bslab, out_dim=output_dim, block_width=bw)
    out = jax.block_until_ready(out)
    assert out.shape == (333, output_dim)
    assert float(jnp.max(jnp.abs(out - reference(x2)))) < 2e-2

    print("KERNEL_OK")
</pallas_src>

<mosaic_0001>
module attributes {stable_mosaic.version = 11 : i64} {
  func.func @kernel(%arg0: i32, %arg1: memref<16x128xf32, #tpu.memory_space<vmem>>, %arg2: memref<9x128x128xf32, #tpu.memory_space<vmem>>, %arg3: memref<9x1x128xf32, #tpu.memory_space<vmem>>, %arg4: memref<16x8xf32, #tpu.memory_space<vmem>>) attributes {dimension_semantics = [#tpu.dimension_semantics<parallel>], iteration_bounds = array<i64: 1>, scalar_prefetch = 0 : i64, scratch_operands = 0 : i64, tpu.core_type = #tpu.core_type<tc>, window_params = [{transform_indices = @transform_0, window_bounds = array<i64: 16, 128>}, {pipeline_mode = #tpu.pipeline_mode<synchronous>, transform_indices = @transform_1, window_bounds = array<i64: 9, 128, 128>}, {pipeline_mode = #tpu.pipeline_mode<synchronous>, transform_indices = @transform_2, window_bounds = array<i64: 9, 1, 128>}, {transform_indices = @transform_3, window_bounds = array<i64: 16, 8>}]} {
    %c0 = arith.constant 0 : index
    %c0_0 = arith.constant 0 : index
    %0 = vector.load %arg1[%c0, %c0_0] : memref<16x128xf32, #tpu.memory_space<vmem>>, vector<8x128xf32>
    %c8 = arith.constant 8 : index
    %c0_1 = arith.constant 0 : index
    %1 = vector.load %arg1[%c8, %c0_1] : memref<16x128xf32, #tpu.memory_space<vmem>>, vector<8x128xf32>
    %c0_2 = arith.constant 0 : index
    %c0_3 = arith.constant 0 : index
    %c0_4 = arith.constant 0 : index
    %2 = vector.load %arg2[%c0_2, %c0_3, %c0_4] : memref<9x128x128xf32, #tpu.memory_space<vmem>>, vector<1x128x128xf32>
    %3 = vector.shape_cast %2 : vector<1x128x128xf32> to vector<128x128xf32>
    %c0_5 = arith.constant 0 : index
    %c0_6 = arith.constant 0 : index
    %c0_7 = arith.constant 0 : index
    %4 = vector.load %arg3[%c0_5, %c0_6, %c0_7] : memref<9x1x128xf32, #tpu.memory_space<vmem>>, vector<1x1x128xf32>
    %5 = vector.shape_cast %4 : vector<1x1x128xf32> to vector<1x128xf32>
    %cst = arith.constant dense<0.000000e+00> : vector<8x128xf32>
    %6 = tpu.matmul %0, %3, %cst {dimension_numbers = #tpu.dot_dimension_numbers<[1], [0], [0], [1], [0, 0, 1, 1], [], []>} : vector<8x128xf32>, vector<128x128xf32>, vector<8x128xf32> -> vector<8x128xf32>
    %7 = vector.broadcast %5 : vector<1x128xf32> to vector<8x128xf32>
    %8 = arith.addf %6, %7 : vector<8x128xf32>
    %9 = math.tanh %8 : vector<8x128xf32>
    %cst_8 = arith.constant dense<0.000000e+00> : vector<8x128xf32>
    %10 = tpu.matmul %1, %3, %cst_8 {dimension_numbers = #tpu.dot_dimension_numbers<[1], [0], [0], [1], [0, 0, 1, 1], [], []>} : vector<8x128xf32>, vector<128x128xf32>, vector<8x128xf32> -> vector<8x128xf32>
    %11 = vector.broadcast %5 : vector<1x128xf32> to vector<8x128xf32>
    %12 = arith.addf %10, %11 : vector<8x128xf32>
    %13 = math.tanh %12 : vector<8x128xf32>
    %c1 = arith.constant 1 : index
    %c0_9 = arith.constant 0 : index
    %c0_10 = arith.constant 0 : index
    %14 = vector.load %arg2[%c1, %c0_9, %c0_10] : memref<9x128x128xf32, #tpu.memory_space<vmem>>, vector<1x128x128xf32>
    %15 = vector.shape_cast %14 : vector<1x128x128xf32> to vector<128x128xf32>
    %c1_11 = arith.constant 1 : index
    %c0_12 = arith.constant 0 : index
    %c0_13 = arith.constant 0 : index
    %16 = vector.load %arg3[%c1_11, %c0_12, %c0_13] : memref<9x1x128xf32, #tpu.memory_space<vmem>>, vector<1x1x128xf32>
    %17 = vector.shape_cast %16 : vector<1x1x128xf32> to vector<1x128xf32>
    %cst_14 = arith.constant dense<0.000000e+00> : vector<8x128xf32>
    %18 = tpu.matmul %9, %15, %cst_14 {dimension_numbers = #tpu.dot_dimension_numbers<[1], [0], [0], [1], [0, 0, 1, 1], [], []>} : vector<8x128xf32>, vector<128x128xf32>, vector<8x128xf32> -> vector<8x128xf32>
    %19 = vector.broadcast %17 : vector<1x128xf32> to vector<8x128xf32>
    %20 = arith.addf %18, %19 : vector<8x128xf32>
    %21 = math.tanh %20 : vector<8x128xf32>
    %cst_15 = arith.constant dense<0.000000e+00> : vector<8x128xf32>
    %22 = tpu.matmul %13, %15, %cst_15 {dimension_numbers = #tpu.dot_dimension_numbers<[1], [0], [0], [1], [0, 0, 1, 1], [], []>} : vector<8x128xf32>, vector<128x128xf32>, vector<8x128xf32> -> vector<8x128xf32>
    %23 = vector.broadcast %17 : vector<1x128xf32> to vector<8x128xf32>
    %24 = arith.addf %22, %23 : vector<8x128xf32>
    %25 = math.tanh %24 : vector<8x128xf32>
    %c2 = arith.constant 2 : index
    %c0_16 = arith.constant 0 : index
    %c0_17 = arith.constant 0 : index
    %26 = vector.load %arg2[%c2, %c0_16, %c0_17] : memref<9x128x128xf32, #tpu.memory_space<vmem>>, vector<1x128x128xf32>
    %27 = vector.shape_cast %26 : vector<1x128x128xf32> to vector<128x128xf32>
    %c2_18 = arith.constant 2 : index
    %c0_19 = arith.constant 0 : index
    %c0_20 = arith.constant 0 : index
    %28 = vector.load %arg3[%c2_18, %c0_19, %c0_20] : memref<9x1x128xf32, #tpu.memory_space<vmem>>, vector<1x1x128xf32>
    %29 = vector.shape_cast %28 : vector<1x1x128xf32> to vector<1x128xf32>
    %cst_21 = arith.constant dense<0.000000e+00> : vector<8x128xf32>
    %30 = tpu.matmul %21, %27, %cst_21 {dimension_numbers = #tpu.dot_dimension_numbers<[1], [0], [0], [1], [0, 0, 1, 1], [], []>} : vector<8x128xf32>, vector<128x128xf32>, vector<8x128xf32> -> vector<8x128xf32>
    %31 = vector.broadcast %29 : vector<1x128xf32> to vector<8x128xf32>
    %32 = arith.addf %30, %31 : vector<8x128xf32>
    %33 = math.tanh %32 : vector<8x128xf32>
    %cst_22 = arith.constant dense<0.000000e+00> : vector<8x128xf32>
    %34 = tpu.matmul %25, %27, %cst_22 {dimension_numbers = #tpu.dot_dimension_numbers<[1], [0], [0], [1], [0, 0, 1, 1], [], []>} : vector<8x128xf32>, vector<128x128xf32>, vector<8x128xf32> -> vector<8x128xf32>
    %35 = vector.broadcast %29 : vector<1x128xf32> to vector<8x128xf32>
    %36 = arith.addf %34, %35 : vector<8x128xf32>
    %37 = math.tanh %36 : vector<8x128xf32>
    %c3 = arith.constant 3 : index
    %c0_23 = arith.constant 0 : index
    %c0_24 = arith.constant 0 : index
    %38 = vector.load %arg2[%c3, %c0_23, %c0_24] : memref<9x128x128xf32, #tpu.memory_space<vmem>>, vector<1x128x128xf32>
    %39 = vector.shape_cast %38 : vector<1x128x128xf32> to vector<128x128xf32>
    %c3_25 = arith.constant 3 : index
    %c0_26 = arith.constant 0 : index
    %c0_27 = arith.constant 0 : index
    %40 = vector.load %arg3[%c3_25, %c0_26, %c0_27] : memref<9x1x128xf32, #tpu.memory_space<vmem>>, vector<1x1x128xf32>
    %41 = vector.shape_cast %40 : vector<1x1x128xf32> to vector<1x128xf32>
    %cst_28 = arith.constant dense<0.000000e+00> : vector<8x128xf32>
    %42 = tpu.matmul %33, %39, %cst_28 {dimension_numbers = #tpu.dot_dimension_numbers<[1], [0], [0], [1], [0, 0, 1, 1], [], []>} : vector<8x128xf32>, vector<128x128xf32>, vector<8x128xf32> -> vector<8x128xf32>
    %43 = vector.broadcast %41 : vector<1x128xf32> to vector<8x128xf32>
    %44 = arith.addf %42, %43 : vector<8x128xf32>
    %45 = math.tanh %44 : vector<8x128xf32>
    %cst_29 = arith.constant dense<0.000000e+00> : vector<8x128xf32>
    %46 = tpu.matmul %37, %39, %cst_29 {dimension_numbers = #tpu.dot_dimension_numbers<[1], [0], [0], [1], [0, 0, 1, 1], [], []>} : vector<8x128xf32>, vector<128x128xf32>, vector<8x128xf32> -> vector<8x128xf32>
    %47 = vector.broadcast %41 : vector<1x128xf32> to vector<8x128xf32>
    %48 = arith.addf %46, %47 : vector<8x128xf32>
    %49 = math.tanh %48 : vector<8x128xf32>
    %c4 = arith.constant 4 : index
    %c0_30 = arith.constant 0 : index
    %c0_31 = arith.constant 0 : index
    %50 = vector.load %arg2[%c4, %c0_30, %c0_31] : memref<9x128x128xf32, #tpu.memory_space<vmem>>, vector<1x128x128xf32>
    %51 = vector.shape_cast %50 : vector<1x128x128xf32> to vector<128x128xf32>
    %c4_32 = arith.constant 4 : index
    %c0_33 = arith.constant 0 : index
    %c0_34 = arith.constant 0 : index
    %52 = vector.load %arg3[%c4_32, %c0_33, %c0_34] : memref<9x1x128xf32, #tpu.memory_space<vmem>>, vector<1x1x128xf32>
    %53 = vector.shape_cast %52 : vector<1x1x128xf32> to vector<1x128xf32>
    %cst_35 = arith.constant dense<0.000000e+00> : vector<8x128xf32>
    %54 = tpu.matmul %45, %51, %cst_35 {dimension_numbers = #tpu.dot_dimension_numbers<[1], [0], [0], [1], [0, 0, 1, 1], [], []>} : vector<8x128xf32>, vector<128x128xf32>, vector<8x128xf32> -> vector<8x128xf32>
    %55 = vector.broadcast %53 : vector<1x128xf32> to vector<8x128xf32>
    %56 = arith.addf %54, %55 : vector<8x128xf32>
    %57 = math.tanh %56 : vector<8x128xf32>
    %cst_36 = arith.constant dense<0.000000e+00> : vector<8x128xf32>
    %58 = tpu.matmul %49, %51, %cst_36 {dimension_numbers = #tpu.dot_dimension_numbers<[1], [0], [0], [1], [0, 0, 1, 1], [], []>} : vector<8x128xf32>, vector<128x128xf32>, vector<8x128xf32> -> vector<8x128xf32>
    %59 = vector.broadcast %53 : vector<1x128xf32> to vector<8x128xf32>
    %60 = arith.addf %58, %59 : vector<8x128xf32>
    %61 = math.tanh %60 : vector<8x128xf32>
    %c5 = arith.constant 5 : index
    %c0_37 = arith.constant 0 : index
    %c0_38 = arith.constant 0 : index
    %62 = vector.load %arg2[%c5, %c0_37, %c0_38] : memref<9x128x128xf32, #tpu.memory_space<vmem>>, vector<1x128x128xf32>
    %63 = vector.shape_cast %62 : vector<1x128x128xf32> to vector<128x128xf32>
    %c5_39 = arith.constant 5 : index
    %c0_40 = arith.constant 0 : index
    %c0_41 = arith.constant 0 : index
    %64 = vector.load %arg3[%c5_39, %c0_40, %c0_41] : memref<9x1x128xf32, #tpu.memory_space<vmem>>, vector<1x1x128xf32>
    %65 = vector.shape_cast %64 : vector<1x1x128xf32> to vector<1x128xf32>
    %cst_42 = arith.constant dense<0.000000e+00> : vector<8x128xf32>
    %66 = tpu.matmul %57, %63, %cst_42 {dimension_numbers = #tpu.dot_dimension_numbers<[1], [0], [0], [1], [0, 0, 1, 1], [], []>} : vector<8x128xf32>, vector<128x128xf32>, vector<8x128xf32> -> vector<8x128xf32>
    %67 = vector.broadcast %65 : vector<1x128xf32> to vector<8x128xf32>
    %68 = arith.addf %66, %67 : vector<8x128xf32>
    %69 = math.tanh %68 : vector<8x128xf32>
    %cst_43 = arith.constant dense<0.000000e+00> : vector<8x128xf32>
    %70 = tpu.matmul %61, %63, %cst_43 {dimension_numbers = #tpu.dot_dimension_numbers<[1], [0], [0], [1], [0, 0, 1, 1], [], []>} : vector<8x128xf32>, vector<128x128xf32>, vector<8x128xf32> -> vector<8x128xf32>
    %71 = vector.broadcast %65 : vector<1x128xf32> to vector<8x128xf32>
    %72 = arith.addf %70, %71 : vector<8x128xf32>
    %73 = math.tanh %72 : vector<8x128xf32>
    %c6 = arith.constant 6 : index
    %c0_44 = arith.constant 0 : index
    %c0_45 = arith.constant 0 : index
    %74 = vector.load %arg2[%c6, %c0_44, %c0_45] : memref<9x128x128xf32, #tpu.memory_space<vmem>>, vector<1x128x128xf32>
    %75 = vector.shape_cast %74 : vector<1x128x128xf32> to vector<128x128xf32>
    %c6_46 = arith.constant 6 : index
    %c0_47 = arith.constant 0 : index
    %c0_48 = arith.constant 0 : index
    %76 = vector.load %arg3[%c6_46, %c0_47, %c0_48] : memref<9x1x128xf32, #tpu.memory_space<vmem>>, vector<1x1x128xf32>
    %77 = vector.shape_cast %76 : vector<1x1x128xf32> to vector<1x128xf32>
    %cst_49 = arith.constant dense<0.000000e+00> : vector<8x128xf32>
    %78 = tpu.matmul %69, %75, %cst_49 {dimension_numbers = #tpu.dot_dimension_numbers<[1], [0], [0], [1], [0, 0, 1, 1], [], []>} : vector<8x128xf32>, vector<128x128xf32>, vector<8x128xf32> -> vector<8x128xf32>
    %79 = vector.broadcast %77 : vector<1x128xf32> to vector<8x128xf32>
    %80 = arith.addf %78, %79 : vector<8x128xf32>
    %81 = math.tanh %80 : vector<8x128xf32>
    %cst_50 = arith.constant dense<0.000000e+00> : vector<8x128xf32>
    %82 = tpu.matmul %73, %75, %cst_50 {dimension_numbers = #tpu.dot_dimension_numbers<[1], [0], [0], [1], [0, 0, 1, 1], [], []>} : vector<8x128xf32>, vector<128x128xf32>, vector<8x128xf32> -> vector<8x128xf32>
    %83 = vector.broadcast %77 : vector<1x128xf32> to vector<8x128xf32>
    %84 = arith.addf %82, %83 : vector<8x128xf32>
    %85 = math.tanh %84 : vector<8x128xf32>
    %c7 = arith.constant 7 : index
    %c0_51 = arith.constant 0 : index
    %c0_52 = arith.constant 0 : index
    %86 = vector.load %arg2[%c7, %c0_51, %c0_52] : memref<9x128x128xf32, #tpu.memory_space<vmem>>, vector<1x128x128xf32>
    %87 = vector.shape_cast %86 : vector<1x128x128xf32> to vector<128x128xf32>
    %c7_53 = arith.constant 7 : index
    %c0_54 = arith.constant 0 : index
    %c0_55 = arith.constant 0 : index
    %88 = vector.load %arg3[%c7_53, %c0_54, %c0_55] : memref<9x1x128xf32, #tpu.memory_space<vmem>>, vector<1x1x128xf32>
    %89 = vector.shape_cast %88 : vector<1x1x128xf32> to vector<1x128xf32>
    %cst_56 = arith.constant dense<0.000000e+00> : vector<8x128xf32>
    %90 = tpu.matmul %81, %87, %cst_56 {dimension_numbers = #tpu.dot_dimension_numbers<[1], [0], [0], [1], [0, 0, 1, 1], [], []>} : vector<8x128xf32>, vector<128x128xf32>, vector<8x128xf32> -> vector<8x128xf32>
    %91 = vector.broadcast %89 : vector<1x128xf32> to vector<8x128xf32>
    %92 = arith.addf %90, %91 : vector<8x128xf32>
    %93 = math.tanh %92 : vector<8x128xf32>
    %cst_57 = arith.constant dense<0.000000e+00> : vector<8x128xf32>
    %94 = tpu.matmul %85, %87, %cst_57 {dimension_numbers = #tpu.dot_dimension_numbers<[1], [0], [0], [1], [0, 0, 1, 1], [], []>} : vector<8x128xf32>, vector<128x128xf32>, vector<8x128xf32> -> vector<8x128xf32>
    %95 = vector.broadcast %89 : vector<1x128xf32> to vector<8x128xf32>
    %96 = arith.addf %94, %95 : vector<8x128xf32>
    %97 = math.tanh %96 : vector<8x128xf32>
    %c8_58 = arith.constant 8 : index
    %c0_59 = arith.constant 0 : index
    %c0_60 = arith.constant 0 : index
    %98 = vector.load %arg2[%c8_58, %c0_59, %c0_60] : memref<9x128x128xf32, #tpu.memory_space<vmem>>, vector<1x128x128xf32>
    %99 = vector.shape_cast %98 : vector<1x128x128xf32> to vector<128x128xf32>
    %100 = vector.extract_strided_slice %99 {offsets = [0, 0], sizes = [128, 8], strides = [1, 1]} : vector<128x128xf32> to vector<128x8xf32>
    %c8_61 = arith.constant 8 : index
    %c0_62 = arith.constant 0 : index
    %c0_63 = arith.constant 0 : index
    %101 = vector.load %arg3[%c8_61, %c0_62, %c0_63] : memref<9x1x128xf32, #tpu.memory_space<vmem>>, vector<1x1x128xf32>
    %102 = vector.shape_cast %101 : vector<1x1x128xf32> to vector<1x128xf32>
    %103 = vector.extract_strided_slice %102 {offsets = [0, 0], sizes = [1, 8], strides = [1, 1]} : vector<1x128xf32> to vector<1x8xf32>
    %cst_64 = arith.constant dense<0.000000e+00> : vector<8x8xf32>
    %104 = tpu.matmul %93, %100, %cst_64 {dimension_numbers = #tpu.dot_dimension_numbers<[1], [0], [0], [1], [0, 0, 1, 1], [], []>} : vector<8x128xf32>, vector<128x8xf32>, vector<8x8xf32> -> vector<8x8xf32>
    %105 = vector.broadcast %103 : vector<1x8xf32> to vector<8x8xf32>
    %106 = arith.addf %104, %105 : vector<8x8xf32>
    %107 = math.tanh %106 : vector<8x8xf32>
    %108 = arith.negf %107 : vector<8x8xf32>
    %109 = math.exp %108 : vector<8x8xf32>
    %cst_65 = arith.constant 1.000000e+00 : f32
    %110 = vector.broadcast %cst_65 : f32 to vector<8x8xf32>
    %111 = arith.addf %110, %109 : vector<8x8xf32>
    %112 = arith.divf %110, %111 : vector<8x8xf32>
    %c0_66 = arith.constant 0 : index
    %c0_67 = arith.constant 0 : index
    %113 = vector.load %arg4[%c0_66, %c0_67] : memref<16x8xf32, #tpu.memory_space<vmem>>, vector<8x8xf32>
    tpu.vector_store %arg4[%c0_66, %c0_67], %112 {strides = array<i32>} : memref<16x8xf32, #tpu.memory_space<vmem>>, vector<8x8xf32>,
    %cst_68 = arith.constant dense<0.000000e+00> : vector<8x8xf32>
    %114 = tpu.matmul %97, %100, %cst_68 {dimension_numbers = #tpu.dot_dimension_numbers<[1], [0], [0], [1], [0, 0, 1, 1], [], []>} : vector<8x128xf32>, vector<128x8xf32>, vector<8x8xf32> -> vector<8x8xf32>
    %115 = vector.broadcast %103 : vector<1x8xf32> to vector<8x8xf32>
    %116 = arith.addf %114, %115 : vector<8x8xf32>
    %117 = math.tanh %116 : vector<8x8xf32>
    %118 = arith.negf %117 : vector<8x8xf32>
    %119 = math.exp %118 : vector<8x8xf32>
    %cst_69 = arith.constant 1.000000e+00 : f32
    %120 = vector.broadcast %cst_69 : f32 to vector<8x8xf32>
    %121 = arith.addf %120, %119 : vector<8x8xf32>
    %122 = arith.divf %120, %121 : vector<8x8xf32>
    %c8_70 = arith.constant 8 : index
    %c0_71 = arith.constant 0 : index
    %123 = vector.load %arg4[%c8_70, %c0_71] : memref<16x8xf32, #tpu.memory_space<vmem>>, vector<8x8xf32>
    tpu.vector_store %arg4[%c8_70, %c0_71], %122 {strides = array<i32>} : memref<16x8xf32, #tpu.memory_space<vmem>>, vector<8x8xf32>,
    return
  }
  func.func @transform_0(%arg0: i32) -> (i32, i32) {
    %c0_i32 = arith.constant 0 : i32
    %c0_i32_0 = arith.constant 0 : i32
    return %arg0, %c0_i32 : i32, i32
  }
  func.func @transform_1(%arg0: i32) -> (i32, i32, i32) {
    %c0_i32 = arith.constant 0 : i32
    %c0_i32_0 = arith.constant 0 : i32
    %c0_i32_1 = arith.constant 0 : i32
    %c0_i32_2 = arith.constant 0 : i32
    return %c0_i32, %c0_i32_0, %c0_i32_1 : i32, i32, i32
  }
  func.func @transform_2(%arg0: i32) -> (i32, i32, i32) {
    %c0_i32 = arith.constant 0 : i32
    %c0_i32_0 = arith.constant 0 : i32
    %c0_i32_1 = arith.constant 0 : i32
    %c0_i32_2 = arith.constant 0 : i32
    return %c0_i32, %c0_i32_0, %c0_i32_1 : i32, i32, i32
  }
  func.func @transform_3(%arg0: i32) -> (i32, i32) {
    %c0_i32 = arith.constant 0 : i32
    %c0_i32_0 = arith.constant 0 : i32
    return %arg0, %c0_i32 : i32, i32
  }
}

</mosaic_0001>

<llo_original>
// kernel: banknn_forward.1
$region0: #{banknn_forward.1}
  #allocation0 [shape = 'u32[]', space=smem, size = 0x4, offset = 0x4, fixed_abs, tag = 'smem constant byte address 0x4 - core index']
  #allocation1 [shape = 'u32[144,128]{1,0:T(1,128)}', space=vmem, size = 0x12000, scoped, tag = 'internal scratch']
  %s0 = inlined_call_operand.vmem [shape: f32[16,128], index: 0, kind: input, shape index: {}]
  %s1 = inlined_call_operand.hbm [shape: f32[9,128,128], index: 1, kind: input, shape index: {}]
  %s2 = inlined_call_operand.vmem [shape: f32[9,1,128], index: 2, kind: input, shape index: {}]
  %s3 = inlined_call_operand.vmem [shape: f32[16,8], index: 3, kind: output, shape index: {}]
  %s4 = sld [smem:[#allocation0]]
  $region26: #{banknn_forward.1} parent=0
    _
  %s6 = ssub.s32 1, %s4
  %s7 = scalar_select 0, %s6, %s4
  $region1: #{banknn_forward.1} parent=0
    #allocation2 [shape = 'u8[589824]{0}', space=vmem, size = 0x90000, scoped, tag = 'input window, operand 1, single buffered']
    #allocation3 [shape = 's32[1]{0}', space=sflag, size = 0x4, scoped, tag = 'scoped memory for banknn_forward.1']
    %8 = vsyncpa [#allocation3], 0
    // Predicated region
    $region2: #{banknn_forward.1} parent=1 // pred_check
      _
    $region3: #{banknn_forward.1} parent=1 // pred_check_branch
      %10 = sbr.rel (0) target = $region5
    $region4: #{banknn_forward.1} parent=1 // pred_region
      _
    $region5: #{banknn_forward.1} parent=1 // pred_fallthru
      _
    // Predicated region
    $region6: #{banknn_forward.1} parent=1 // pred_check
      _
    $region7: #{banknn_forward.1} parent=1 // pred_check_branch
      %12 = sbr.rel (0) target = $region9
    $region8: #{banknn_forward.1} parent=1 // pred_region
      %s14 = ssub.s32 18432, 18432
      %15 = vsyncadd [#allocation3], %s14
      %s16 = sshll.u32 [#allocation2], 4
      %s17 = int_to_ptr.vmem [resolvable:$true] %s16
      %22 = dma.hbm_to_vmem [thread:$0]  %s1, 18432, %s17, [#allocation3], 128, 128, 8
    $region9: #{banknn_forward.1} parent=1 // pred_fallthru
      _
    // Predicated region
    $region10: #{banknn_forward.1} parent=1 // pred_check
      _
    $region11: #{banknn_forward.1} parent=1 // pred_check_branch
      %24 = sbr.rel (0) target = $region13
    $region12: #{banknn_forward.1} parent=1 // pred_region
      _
    $region13: #{banknn_forward.1} parent=1 // pred_fallthru
      _
    // Predicated region
    $region14: #{banknn_forward.1} parent=1 // pred_check
      _
    $region15: #{banknn_forward.1} parent=1 // pred_check_branch
      %26 = sbr.rel (0) target = $region17
    $region16: #{banknn_forward.1} parent=1 // pred_region
      %27 = dma.done [#allocation3], 18432
    $region17: #{banknn_forward.1} parent=1 // pred_fallthru
      _
    %v28 = vld [vmem:[%s0] sm:$0xff]
    %v29 = vld [vmem:[%s0 + $0x8] sm:$0xff]
    %v30 = vld [vmem:[#allocation2] sm:$0xff]
    %v31 = vld [vmem:[#allocation2 + $0x8] sm:$0xff]
    %v32 = vld [vmem:[#allocation2 + $0x10] sm:$0xff]
    %v33 = vld [vmem:[#allocation2 + $0x18] sm:$0xff]
    %v34 = vld [vmem:[#allocation2 + $0x20] sm:$0xff]
    %v35 = vld [vmem:[#allocation2 + $0x28] sm:$0xff]
    %v36 = vld [vmem:[#allocation2 + $0x30] sm:$0xff]
    %v37 = vld [vmem:[#allocation2 + $0x38] sm:$0xff]
    %v38 = vld [vmem:[#allocation2 + $0x40] sm:$0xff]
    %v39 = vld [vmem:[#allocation2 + $0x48] sm:$0xff]
    %v40 = vld [vmem:[#allocation2 + $0x50] sm:$0xff]
    %v41 = vld [vmem:[#allocation2 + $0x58] sm:$0xff]
    %v42 = vld [vmem:[#allocation2 + $0x60] sm:$0xff]
    %v43 = vld [vmem:[#allocation2 + $0x68] sm:$0xff]
    %v44 = vld [vmem:[#allocation2 + $0x70] sm:$0xff]
    %v45 = vld [vmem:[#allocation2 + $0x78] sm:$0xff]
    %v46 = vld [vmem:[%s2] sm:$0x1]
    %v48 = vlaneseq
    %v49 = vshrl.u32 %v48, 7
    %v50 = vsub.s32 0, %v49
    %v51 = vrot.slane %v46, %v50
    %53 = vmatprep.subr.mxu0 0.0
    %54 = vmatpush1.msra.mxu0 %v30
    %55 = vmatprep.subr.mxu0 0.0
    %56 = vmatpush1.msra.mxu0 %v31
    %57 = vmatprep.subr.mxu0 0.0
    %58 = vmatpush1.msra.mxu0 %v32
    %59 = vmatprep.subr.mxu0 0.0
    %60 = vmatpush1.msra.mxu0 %v33
    %61 = vmatprep.subr.mxu0 0.0
    %62 = vmatpush1.msra.mxu0 %v34
    %63 = vmatprep.subr.mxu0 0.0
    %64 = vmatpush1.msra.mxu0 %v35
    %65 = vmatprep.subr.mxu0 0.0
    %66 = vmatpush1.msra.mxu0 %v36
    %67 = vmatprep.subr.mxu0 0.0
    %68 = vmatpush1.msra.mxu0 %v37
    %69 = vmatprep.subr.mxu0 0.0
    %70 = vmatpush1.msra.mxu0 %v38
    %71 = vmatprep.subr.mxu0 0.0
    %72 = vmatpush1.msra.mxu0 %v39
    %73 = vmatprep.subr.mxu0 0.0
    %74 = vmatpush1.msra.mxu0 %v40
    %75 = vmatprep.subr.mxu0 0.0
    %76 = vmatpush1.msra.mxu0 %v41
    %77 = vmatprep.subr.mxu0 0.0
    %78 = vmatpush1.msra.mxu0 %v42
    %79 = vmatprep.subr.mxu0 0.0
    %80 = vmatpush1.msra.mxu0 %v43
    %81 = vmatprep.subr.mxu0 0.0
    %82 = vmatpush1.msra.mxu0 %v44
    %83 = vmatprep.subr.mxu0 0.0
    %84 = vmatpush1.msra.mxu0 %v45
    %85 = vmatprep.subr.mxu0 0.0
    %86 = vmatpush1.msra.mxu0 0.0
    %87 = vmatprep.subr.mxu0 0.0
    %88 = vmatpush1.msra.mxu0 0.0
    %89 = vmatprep.subr.mxu0 0.0
    %90 = vmatpush1.msra.mxu0 0.0
    %91 = vmatprep.subr.mxu0 0.0
    %92 = vmatpush1.msra.mxu0 0.0
    %93 = vmatprep.subr.mxu0 0.0
    %94 = vmatpush1.msra.mxu0 0.0
    %95 = vmatprep.subr.mxu0 0.0
    %96 = vmatpush1.msra.mxu0 0.0
    %97 = vmatprep.subr.mxu0 0.0
    %98 = vmatpush1.msra.mxu0 0.0
    %99 = vmatprep.subr.mxu0 0.0
    %100 = vmatpush1.msra.mxu0 0.0
    %101 = vmatprep.subr.mxu0 0.0
    %102 = vmatpush1.msra.mxu0 0.0
    %103 = vmatprep.subr.mxu0 0.0
    %104 = vmatpush1.msra.mxu0 0.0
    %105 = vmatprep.subr.mxu0 0.0
    %106 = vmatpush1.msra.mxu0 0.0
    %107 = vmatprep.subr.mxu0 0.0
    %108 = vmatpush1.msra.mxu0 0.0
    %109 = vmatprep.subr.mxu0 0.0
    %110 = vmatpush1.msra.mxu0 0.0
    %111 = vmatprep.subr.mxu0 0.0
    %112 = vmatpush1.msra.mxu0 0.0
    %113 = vmatprep.subr.mxu0 0.0
    %114 = vmatpush1.msra.mxu0 0.0
    %115 = vmatprep.subr.mxu0 0.0
    %116 = vmatpush1.msra.mxu0 0.0
    %117 = vmatprep.mubr.f32.mxu0 0.0
    %118 = vmatmul.mubr.f32.gmra.mrb[0].mxu0 %v28
    %v119 = vpop.f32.mrb[0].mxu0
    %v120 = vadd.f32 %v51, %v119
    %v121 = vpop.f32.mrb[0].mxu0
    %122 = vdwg.mxu0
    %v123 = vtanh.pop %v120
    %124 = vmatprep.subr.mxu0 0.0
    %125 = vmatpush1.msra.mxu0 %v30
    %126 = vmatprep.subr.mxu0 0.0
    %127 = vmatpush1.msra.mxu0 %v31
    %128 = vmatprep.subr.mxu0 0.0
    %129 = vmatpush1.msra.mxu0 %v32
    %130 = vmatprep.subr.mxu0 0.0
    %131 = vmatpush1.msra.mxu0 %v33
    %132 = vmatprep.subr.mxu0 0.0
    %133 = vmatpush1.msra.mxu0 %v34
    %134 = vmatprep.subr.mxu0 0.0
    %135 = vmatpush1.msra.mxu0 %v35
    %136 = vmatprep.subr.mxu0 0.0
    %137 = vmatpush1.msra.mxu0 %v36
    %138 = vmatprep.subr.mxu0 0.0
    %139 = vmatpush1.msra.mxu0 %v37
    %140 = vmatprep.subr.mxu0 0.0
    %141 = vmatpush1.msra.mxu0 %v38
    %142 = vmatprep.subr.mxu0 0.0
    %143 = vmatpush1.msra.mxu0 %v39
    %144 = vmatprep.subr.mxu0 0.0
    %145 = vmatpush1.msra.mxu0 %v40
    %146 = vmatprep.subr.mxu0 0.0
    %147 = vmatpush1.msra.mxu0 %v41
    %148 = vmatprep.subr.mxu0 0.0
    %149 = vmatpush1.msra.mxu0 %v42
    %150 = vmatprep.subr.mxu0 0.0
    %151 = vmatpush1.msra.mxu0 %v43
    %152 = vmatprep.subr.mxu0 0.0
    %153 = vmatpush1.msra.mxu0 %v44
    %154 = vmatprep.subr.mxu0 0.0
    %155 = vmatpush1.msra.mxu0 %v45
    %156 = vmatprep.subr.mxu0 0.0
    %157 = vmatpush1.msra.mxu0 0.0
    %158 = vmatprep.subr.mxu0 0.0
    %159 = vmatpush1.msra.mxu0 0.0
    %160 = vmatprep.subr.mxu0 0.0
    %161 = vmatpush1.msra.mxu0 0.0
    %162 = vmatprep.subr.mxu0 0.0
    %163 = vmatpush1.msra.mxu0 0.0
    %164 = vmatprep.subr.mxu0 0.0
    %165 = vmatpush1.msra.mxu0 0.0
    %166 = vmatprep.subr.mxu0 0.0
    %167 = vmatpush1.msra.mxu0 0.0
    %168 = vmatprep.subr.mxu0 0.0
    %169 = vmatpush1.msra.mxu0 0.0
    %170 = vmatprep.subr.mxu0 0.0
    %171 = vmatpush1.msra.mxu0 0.0
    %172 = vmatprep.subr.mxu0 0.0
    %173 = vmatpush1.msra.mxu0 0.0
    %174 = vmatprep.subr.mxu0 0.0
    %175 = vmatpush1.msra.mxu0 0.0
    %176 = vmatprep.subr.mxu0 0.0
    %177 = vmatpush1.msra.mxu0 0.0
    %178 = vmatprep.subr.mxu0 0.0
    %179 = vmatpush1.msra.mxu0 0.0
    %180 = vmatprep.subr.mxu0 0.0
    %181 = vmatpush1.msra.mxu0 0.0
    %182 = vmatprep.subr.mxu0 0.0
    %183 = vmatpush1.msra.mxu0 0.0
    %184 = vmatprep.subr.mxu0 0.0
    %185 = vmatpush1.msra.mxu0 0.0
    %186 = vmatprep.subr.mxu0 0.0
    %187 = vmatpush1.msra.mxu0 0.0
    %188 = vmatprep.mubr.f32.mxu0 0.0
    %189 = vmatmul.mubr.f32.gmra.mrb[0].mxu0 %v29
    %v190 = vpop.f32.mrb[0].mxu0
    %v191 = vadd.f32 %v51, %v190
    %v192 = vpop.f32.mrb[0].mxu0
    %193 = vdwg.mxu0
    %v194 = vtanh.pop %v191
    %s195 = scalar_lea.vmem [#allocation2], 128
    %v196 = vld [vmem:[%s195] sm:$0xff]
    %v197 = vld [vmem:[%s195 + $0x8] sm:$0xff]
    %v198 = vld [vmem:[%s195 + $0x10] sm:$0xff]
    %v199 = vld [vmem:[%s195 + $0x18] sm:$0xff]
    %v200 = vld [vmem:[%s195 + $0x20] sm:$0xff]
    %v201 = vld [vmem:[%s195 + $0x28] sm:$0xff]
    %v202 = vld [vmem:[%s195 + $0x30] sm:$0xff]
    %v203 = vld [vmem:[%s195 + $0x38] sm:$0xff]
    %v204 = vld [vmem:[%s195 + $0x40] sm:$0xff]
    %v205 = vld [vmem:[%s195 + $0x48] sm:$0xff]
    %v206 = vld [vmem:[%s195 + $0x50] sm:$0xff]
    %v207 = vld [vmem:[%s195 + $0x58] sm:$0xff]
    %v208 = vld [vmem:[%s195 + $0x60] sm:$0xff]
    %v209 = vld [vmem:[%s195 + $0x68] sm:$0xff]
    %v210 = vld [vmem:[%s195 + $0x70] sm:$0xff]
    %v211 = vld [vmem:[%s195 + $0x78] sm:$0xff]
    %s212 = scalar_lea.vmem %s2, 1
    %v213 = vld [vmem:[%s212] sm:$0x1]
    %v215 = vlaneseq
    %v216 = vshrl.u32 %v215, 7
    %v217 = vsub.s32 0, %v216
    %v218 = vrot.slane %v213, %v217
    %220 = vmatprep.subr.mxu0 0.0
    %221 = vmatpush1.msra.mxu0 %v196
    %222 = vmatprep.subr.mxu0 0.0
    %223 = vmatpush1.msra.mxu0 %v197
    %224 = vmatprep.subr.mxu0 0.0
    %225 = vmatpush1.msra.mxu0 %v198
    %226 = vmatprep.subr.mxu0 0.0
    %227 = vmatpush1.msra.mxu0 %v199
    %228 = vmatprep.subr.mxu0 0.0
    %229 = vmatpush1.msra.mxu0 %v200
    %230 = vmatprep.subr.mxu0 0.0
    %231 = vmatpush1.msra.mxu0 %v201
    %232 = vmatprep.subr.mxu0 0.0
    %233 = vmatpush1.msra.mxu0 %v202
    %234 = vmatprep.subr.mxu0 0.0
    %235 = vmatpush1.msra.mxu0 %v203
    %236 = vmatprep.subr.mxu0 0.0
    %237 = vmatpush1.msra.mxu0 %v204
    %238 = vmatprep.subr.mxu0 0.0
    %239 = vmatpush1.msra.mxu0 %v205
    %240 = vmatprep.subr.mxu0 0.0
    %241 = vmatpush1.msra.mxu0 %v206
    %242 = vmatprep.subr.mxu0 0.0
    %243 = vmatpush1.msra.mxu0 %v207
    %244 = vmatprep.subr.mxu0 0.0
    %245 = vmatpush1.msra.mxu0 %v208
    %246 = vmatprep.subr.mxu0 0.0
    %247 = vmatpush1.msra.mxu0 %v209
    %248 = vmatprep.subr.mxu0 0.0
    %249 = vmatpush1.msra.mxu0 %v210
    %250 = vmatprep.subr.mxu0 0.0
    %251 = vmatpush1.msra.mxu0 %v211
    %252 = vmatprep.subr.mxu0 0.0
    %253 = vmatpush1.msra.mxu0 0.0
    %254 = vmatprep.subr.mxu0 0.0
    %255 = vmatpush1.msra.mxu0 0.0
    %256 = vmatprep.subr.mxu0 0.0
    %257 = vmatpush1.msra.mxu0 0.0
    %258 = vmatprep.subr.mxu0 0.0
    %259 = vmatpush1.msra.mxu0 0.0
    %260 = vmatprep.subr.mxu0 0.0
    %261 = vmatpush1.msra.mxu0 0.0
    %262 = vmatprep.subr.mxu0 0.0
    %263 = vmatpush1.msra.mxu0 0.0
    %264 = vmatprep.subr.mxu0 0.0
    %265 = vmatpush1.msra.mxu0 0.0
    %266 = vmatprep.subr.mxu0 0.0
    %267 = vmatpush1.msra.mxu0 0.0
    %268 = vmatprep.subr.mxu0 0.0
    %269 = vmatpush1.msra.mxu0 0.0
    %270 = vmatprep.subr.mxu0 0.0
    %271 = vmatpush1.msra.mxu0 0.0
    %272 = vmatprep.subr.mxu0 0.0
    %273 = vmatpush1.msra.mxu0 0.0
    %274 = vmatprep.subr.mxu0 0.0
    %275 = vmatpush1.msra.mxu0 0.0
    %276 = vmatprep.subr.mxu0 0.0
    %277 = vmatpush1.msra.mxu0 0.0
    %278 = vmatprep.subr.mxu0 0.0
    %279 = vmatpush1.msra.mxu0 0.0
    %280 = vmatprep.subr.mxu0 0.0
    %281 = vmatpush1.msra.mxu0 0.0
    %282 = vmatprep.subr.mxu0 0.0
    %283 = vmatpush1.msra.mxu0 0.0
    %284 = vmatprep.mubr.f32.mxu0 0.0
    %285 = vmatmul.mubr.f32.gmra.mrb[0].mxu0 %v123
    %v286 = vpop.f32.mrb[0].mxu0
    %v287 = vadd.f32 %v218, %v286
    %v288 = vpop.f32.mrb[0].mxu0
    %289 = vdwg.mxu0
    %v290 = vtanh.pop %v287
    %291 = vmatprep.subr.mxu0 0.0
    %292 = vmatpush1.msra.mxu0 %v196
    %293 = vmatprep.subr.mxu0 0.0
    %294 = vmatpush1.msra.mxu0 %v197
    %295 = vmatprep.subr.mxu0 0.0
    %296 = vmatpush1.msra.mxu0 %v198
    %297 = vmatprep.subr.mxu0 0.0
    %298 = vmatpush1.msra.mxu0 %v199
    %299 = vmatprep.subr.mxu0 0.0
    %300 = vmatpush1.msra.mxu0 %v200
    %301 = vmatprep.subr.mxu0 0.0
    %302 = vmatpush1.msra.mxu0 %v201
    %303 = vmatprep.subr.mxu0 0.0
    %304 = vmatpush1.msra.mxu0 %v202
    %305 = vmatprep.subr.mxu0 0.0
    %306 = vmatpush1.msra.mxu0 %v203
    %307 = vmatprep.subr.mxu0 0.0
    %308 = vmatpush1.msra.mxu0 %v204
    %309 = vmatprep.subr.mxu0 0.0
    %310 = vmatpush1.msra.mxu0 %v205
    %311 = vmatprep.subr.mxu0 0.0
    %312 = vmatpush1.msra.mxu0 %v206
    %313 = vmatprep.subr.mxu0 0.0
    %314 = vmatpush1.msra.mxu0 %v207
    %315 = vmatprep.subr.mxu0 0.0
    %316 = vmatpush1.msra.mxu0 %v208
    %317 = vmatprep.subr.mxu0 0.0
    %318 = vmatpush1.msra.mxu0 %v209
    %319 = vmatprep.subr.mxu0 0.0
    %320 = vmatpush1.msra.mxu0 %v210
    %321 = vmatprep.subr.mxu0 0.0
    %322 = vmatpush1.msra.mxu0 %v211
    %323 = vmatprep.subr.mxu0 0.0
    %324 = vmatpush1.msra.mxu0 0.0
    %325 = vmatprep.subr.mxu0 0.0
    %326 = vmatpush1.msra.mxu0 0.0
    %327 = vmatprep.subr.mxu0 0.0
    %328 = vmatpush1.msra.mxu0 0.0
    %329 = vmatprep.subr.mxu0 0.0
    %330 = vmatpush1.msra.mxu0 0.0
    %331 = vmatprep.subr.mxu0 0.0
    %332 = vmatpush1.msra.mxu0 0.0
    %333 = vmatprep.subr.mxu0 0.0
    %334 = vmatpush1.msra.mxu0 0.0
    %335 = vmatprep.subr.mxu0 0.0
    %336 = vmatpush1.msra.mxu0 0.0
    %337 = vmatprep.subr.mxu0 0.0
    %338 = vmatpush1.msra.mxu0 0.0
    %339 = vmatprep.subr.mxu0 0.0
    %340 = vmatpush1.msra.mxu0 0.0
    %341 = vmatprep.subr.mxu0 0.0
    %342 = vmatpush1.msra.mxu0 0.0
    %343 = vmatprep.subr.mxu0 0.0
    %344 = vmatpush1.msra.mxu0 0.0
    %345 = vmatprep.subr.mxu0 0.0
    %346 = vmatpush1.msra.mxu0 0.0
    %347 = vmatprep.subr.mxu0 0.0
    %348 = vmatpush1.msra.mxu0 0.0
    %349 = vmatprep.subr.mxu0 0.0
    %350 = vmatpush1.msra.mxu0 0.0
    %351 = vmatprep.subr.mxu0 0.0
    %352 = vmatpush1.msra.mxu0 0.0
    %353 = vmatprep.subr.mxu0 0.0
    %354 = vmatpush1.msra.mxu0 0.0
    %355 = vmatprep.mubr.f32.mxu0 0.0
    %356 = vmatmul.mubr.f32.gmra.mrb[0].mxu0 %v194
    %v357 = vpop.f32.mrb[0].mxu0
    %v358 = vadd.f32 %v218, %v357
    %v359 = vpop.f32.mrb[0].mxu0
    %360 = vdwg.mxu0
    %v361 = vtanh.pop %v358
    %s362 = scalar_lea.vmem [#allocation2], 256
    %v363 = vld [vmem:[%s362] sm:$0xff]
    %v364 = vld [vmem:[%s362 + $0x8] sm:$0xff]
    %v365 = vld [vmem:[%s362 + $0x10] sm:$0xff]
    %v366 = vld [vmem:[%s362 + $0x18] sm:$0xff]
    %v367 = vld [vmem:[%s362 + $0x20] sm:$0xff]
    %v368 = vld [vmem:[%s362 + $0x28] sm:$0xff]
    %v369 = vld [vmem:[%s362 + $0x30] sm:$0xff]
    %v370 = vld [vmem:[%s362 + $0x38] sm:$0xff]
    %v371 = vld [vmem:[%s362 + $0x40] sm:$0xff]
    %v372 = vld [vmem:[%s362 + $0x48] sm:$0xff]
    %v373 = vld [vmem:[%s362 + $0x50] sm:$0xff]
    %v374 = vld [vmem:[%s362 + $0x58] sm:$0xff]
    %v375 = vld [vmem:[%s362 + $0x60] sm:$0xff]
    %v376 = vld [vmem:[%s362 + $0x68] sm:$0xff]
    %v377 = vld [vmem:[%s362 + $0x70] sm:$0xff]
    %v378 = vld [vmem:[%s362 + $0x78] sm:$0xff]
    %s379 = scalar_lea.vmem %s2, 2
    %v380 = vld [vmem:[%s379] sm:$0x1]
    %v382 = vlaneseq
    %v383 = vshrl.u32 %v382, 7
    %v384 = vsub.s32 0, %v383
    %v385 = vrot.slane %v380, %v384
    %387 = vmatprep.subr.mxu0 0.0
    %388 = vmatpush1.msra.mxu0 %v363
    %389 = vmatprep.subr.mxu0 0.0
    %390 = vmatpush1.msra.mxu0 %v364
    %391 = vmatprep.subr.mxu0 0.0
    %392 = vmatpush1.msra.mxu0 %v365
    %393 = vmatprep.subr.mxu0 0.0
    %394 = vmatpush1.msra.mxu0 %v366
    %395 = vmatprep.subr.mxu0 0.0
    %396 = vmatpush1.msra.mxu0 %v367
    %397 = vmatprep.subr.mxu0 0.0
    %398 = vmatpush1.msra.mxu0 %v368
    %399 = vmatprep.subr.mxu0 0.0
    %400 = vmatpush1.msra.mxu0 %v369
    %401 = vmatprep.subr.mxu0 0.0
    %402 = vmatpush1.msra.mxu0 %v370
    %403 = vmatprep.subr.mxu0 0.0
    %404 = vmatpush1.msra.mxu0 %v371
    %405 = vmatprep.subr.mxu0 0.0
    %406 = vmatpush1.msra.mxu0 %v372
    %407 = vmatprep.subr.mxu0 0.0
    %408 = vmatpush1.msra.mxu0 %v373
    %409 = vmatprep.subr.mxu0 0.0
    %410 = vmatpush1.msra.mxu0 %v374
    %411 = vmatprep.subr.mxu0 0.0
    %412 = vmatpush1.msra.mxu0 %v375
    %413 = vmatprep.subr.mxu0 0.0
    %414 = vmatpush1.msra.mxu0 %v376
    %415 = vmatprep.subr.mxu0 0.0
    %416 = vmatpush1.msra.mxu0 %v377
    %417 = vmatprep.subr.mxu0 0.0
    %418 = vmatpush1.msra.mxu0 %v378
    %419 = vmatprep.subr.mxu0 0.0
    %420 = vmatpush1.msra.mxu0 0.0
    %421 = vmatprep.subr.mxu0 0.0
    %422 = vmatpush1.msra.mxu0 0.0
    %423 = vmatprep.subr.mxu0 0.0
    %424 = vmatpush1.msra.mxu0 0.0
    %425 = vmatprep.subr.mxu0 0.0
    %426 = vmatpush1.msra.mxu0 0.0
    %427 = vmatprep.subr.mxu0 0.0
    %428 = vmatpush1.msra.mxu0 0.0
    %429 = vmatprep.subr.mxu0 0.0
    %430 = vmatpush1.msra.mxu0 0.0
    %431 = vmatprep.subr.mxu0 0.0
    %432 = vmatpush1.msra.mxu0 0.0
    %433 = vmatprep.subr.mxu0 0.0
    %434 = vmatpush1.msra.mxu0 0.0
    %435 = vmatprep.subr.mxu0 0.0
    %436 = vmatpush1.msra.mxu0 0.0
    %437 = vmatprep.subr.mxu0 0.0
    %438 = vmatpush1.msra.mxu0 0.0
    %439 = vmatprep.subr.mxu0 0.0
    %440 = vmatpush1.msra.mxu0 0.0
    %441 = vmatprep.subr.mxu0 0.0
    %442 = vmatpush1.msra.mxu0 0.0
    %443 = vmatprep.subr.mxu0 0.0
    %444 = vmatpush1.msra.mxu0 0.0
    %445 = vmatprep.subr.mxu0 0.0
    %446 = vmatpush1.msra.mxu0 0.0
    %447 = vmatprep.subr.mxu0 0.0
    %448 = vmatpush1.msra.mxu0 0.0
    %449 = vmatprep.subr.mxu0 0.0
    %450 = vmatpush1.msra.mxu0 0.0
    %451 = vmatprep.mubr.f32.mxu0 0.0
    %452 = vmatmul.mubr.f32.gmra.mrb[0].mxu0 %v290
    %v453 = vpop.f32.mrb[0].mxu0
    %v454 = vadd.f32 %v385, %v453
    %v455 = vpop.f32.mrb[0].mxu0
    %456 = vdwg.mxu0
    %v457 = vtanh.pop %v454
    %458 = vmatprep.subr.mxu0 0.0
    %459 = vmatpush1.msra.mxu0 %v363
    %460 = vmatprep.subr.mxu0 0.0
    %461 = vmatpush1.msra.mxu0 %v364
    %462 = vmatprep.subr.mxu0 0.0
    %463 = vmatpush1.msra.mxu0 %v365
    %464 = vmatprep.subr.mxu0 0.0
    %465 = vmatpush1.msra.mxu0 %v366
    %466 = vmatprep.subr.mxu0 0.0
    %467 = vmatpush1.msra.mxu0 %v367
    %468 = vmatprep.subr.mxu0 0.0
    %469 = vmatpush1.msra.mxu0 %v368
    %470 = vmatprep.subr.mxu0 0.0
    %471 = vmatpush1.msra.mxu0 %v369
    %472 = vmatprep.subr.mxu0 0.0
    %473 = vmatpush1.msra.mxu0 %v370
    %474 = vmatprep.subr.mxu0 0.0
    %475 = vmatpush1.msra.mxu0 %v371
    %476 = vmatprep.subr.mxu0 0.0
    %477 = vmatpush1.msra.mxu0 %v372
    %478 = vmatprep.subr.mxu0 0.0
    %479 = vmatpush1.msra.mxu0 %v373
    %480 = vmatprep.subr.mxu0 0.0
    %481 = vmatpush1.msra.mxu0 %v374
    %482 = vmatprep.subr.mxu0 0.0
    %483 = vmatpush1.msra.mxu0 %v375
    %484 = vmatprep.subr.mxu0 0.0
    %485 = vmatpush1.msra.mxu0 %v376
    %486 = vmatprep.subr.mxu0 0.0
    %487 = vmatpush1.msra.mxu0 %v377
    %488 = vmatprep.subr.mxu0 0.0
    %489 = vmatpush1.msra.mxu0 %v378
    %490 = vmatprep.subr.mxu0 0.0
    %491 = vmatpush1.msra.mxu0 0.0
    %492 = vmatprep.subr.mxu0 0.0
    %493 = vmatpush1.msra.mxu0 0.0
    %494 = vmatprep.subr.mxu0 0.0
    %495 = vmatpush1.msra.mxu0 0.0
    %496 = vmatprep.subr.mxu0 0.0
    %497 = vmatpush1.msra.mxu0 0.0
    %498 = vmatprep.subr.mxu0 0.0
    %499 = vmatpush1.msra.mxu0 0.0
    %500 = vmatprep.subr.mxu0 0.0
    %501 = vmatpush1.msra.mxu0 0.0
    %502 = vmatprep.subr.mxu0 0.0
    %503 = vmatpush1.msra.mxu0 0.0
    %504 = vmatprep.subr.mxu0 0.0
    %505 = vmatpush1.msra.mxu0 0.0
    %506 = vmatprep.subr.mxu0 0.0
    %507 = vmatpush1.msra.mxu0 0.0
    %508 = vmatprep.subr.mxu0 0.0
    %509 = vmatpush1.msra.mxu0 0.0
    %510 = vmatprep.subr.mxu0 0.0
    %511 = vmatpush1.msra.mxu0 0.0
    %512 = vmatprep.subr.mxu0 0.0
    %513 = vmatpush1.msra.mxu0 0.0
    %514 = vmatprep.subr.mxu0 0.0
    %515 = vmatpush1.msra.mxu0 0.0
    %516 = vmatprep.subr.mxu0 0.0
    %517 = vmatpush1.msra.mxu0 0.0
    %518 = vmatprep.subr.mxu0 0.0
    %519 = vmatpush1.msra.mxu0 0.0
    %520 = vmatprep.subr.mxu0 0.0
    %521 = vmatpush1.msra.mxu0 0.0
    %522 = vmatprep.mubr.f32.mxu0 0.0
    %523 = vmatmul.mubr.f32.gmra.mrb[0].mxu0 %v361
    %v524 = vpop.f32.mrb[0].mxu0
    %v525 = vadd.f32 %v385, %v524
    %v526 = vpop.f32.mrb[0].mxu0
    %527 = vdwg.mxu0
    %v528 = vtanh.pop %v525
    %s529 = scalar_lea.vmem [#allocation2], 384
    %v530 = vld [vmem:[%s529] sm:$0xff]
    %v531 = vld [vmem:[%s529 + $0x8] sm:$0xff]
    %v532 = vld [vmem:[%s529 + $0x10] sm:$0xff]
    %v533 = vld [vmem:[%s529 + $0x18] sm:$0xff]
    %v534 = vld [vmem:[%s529 + $0x20] sm:$0xff]
    %v535 = vld [vmem:[%s529 + $0x28] sm:$0xff]
    %v536 = vld [vmem:[%s529 + $0x30] sm:$0xff]
    %v537 = vld [vmem:[%s529 + $0x38] sm:$0xff]
    %v538 = vld [vmem:[%s529 + $0x40] sm:$0xff]
    %v539 = vld [vmem:[%s529 + $0x48] sm:$0xff]
    %v540 = vld [vmem:[%s529 + $0x50] sm:$0xff]
    %v541 = vld [vmem:[%s529 + $0x58] sm:$0xff]
    %v542 = vld [vmem:[%s529 + $0x60] sm:$0xff]
    %v543 = vld [vmem:[%s529 + $0x68] sm:$0xff]
    %v544 = vld [vmem:[%s529 + $0x70] sm:$0xff]
    %v545 = vld [vmem:[%s529 + $0x78] sm:$0xff]
    %s546 = scalar_lea.vmem %s2, 3
    %v547 = vld [vmem:[%s546] sm:$0x1]
    %v549 = vlaneseq
    %v550 = vshrl.u32 %v549, 7
    %v551 = vsub.s32 0, %v550
    %v552 = vrot.slane %v547, %v551
    %554 = vmatprep.subr.mxu0 0.0
    %555 = vmatpush1.msra.mxu0 %v530
    %556 = vmatprep.subr.mxu0 0.0
    %557 = vmatpush1.msra.mxu0 %v531
    %558 = vmatprep.subr.mxu0 0.0
    %559 = vmatpush1.msra.mxu0 %v532
    %560 = vmatprep.subr.mxu0 0.0
    %561 = vmatpush1.msra.mxu0 %v533
    %562 = vmatprep.subr.mxu0 0.0
    %563 = vmatpush1.msra.mxu0 %v534
    %564 = vmatprep.subr.mxu0 0.0
    %565 = vmatpush1.msra.mxu0 %v535
    %566 = vmatprep.subr.mxu0 0.0
    %567 = vmatpush1.msra.mxu0 %v536
    %568 = vmatprep.subr.mxu0 0.0
    %569 = vmatpush1.msra.mxu0 %v537
    %570 = vmatprep.subr.mxu0 0.0
    %571 = vmatpush1.msra.mxu0 %v538
    %572 = vmatprep.subr.mxu0 0.0
    %573 = vmatpush1.msra.mxu0 %v539
    %574 = vmatprep.subr.mxu0 0.0
    %575 = vmatpush1.msra.mxu0 %v540
    %576 = vmatprep.subr.mxu0 0.0
    %577 = vmatpush1.msra.mxu0 %v541
    %578 = vmatprep.subr.mxu0 0.0
    %579 = vmatpush1.msra.mxu0 %v542
    %580 = vmatprep.subr.mxu0 0.0
    %581 = vmatpush1.msra.mxu0 %v543
    %582 = vmatprep.subr.mxu0 0.0
    %583 = vmatpush1.msra.mxu0 %v544
    %584 = vmatprep.subr.mxu0 0.0
    %585 = vmatpush1.msra.mxu0 %v545
    %586 = vmatprep.subr.mxu0 0.0
    %587 = vmatpush1.msra.mxu0 0.0
    %588 = vmatprep.subr.mxu0 0.0
    %589 = vmatpush1.msra.mxu0 0.0
    %590 = vmatprep.subr.mxu0 0.0
    %591 = vmatpush1.msra.mxu0 0.0
    %592 = vmatprep.subr.mxu0 0.0
    %593 = vmatpush1.msra.mxu0 0.0
    %594 = vmatprep.subr.mxu0 0.0
    %595 = vmatpush1.msra.mxu0 0.0
    %596 = vmatprep.subr.mxu0 0.0
    %597 = vmatpush1.msra.mxu0 0.0
    %598 = vmatprep.subr.mxu0 0.0
    %599 = vmatpush1.msra.mxu0 0.0
    %600 = vmatprep.subr.mxu0 0.0
    %601 = vmatpush1.msra.mxu0 0.0
    %602 = vmatprep.subr.mxu0 0.0
    %603 = vmatpush1.msra.mxu0 0.0
    %604 = vmatprep.subr.mxu0 0.0
    %605 = vmatpush1.msra.mxu0 0.0
    %606 = vmatprep.subr.mxu0 0.0
    %607 = vmatpush1.msra.mxu0 0.0
    %608 = vmatprep.subr.mxu0 0.0
    %609 = vmatpush1.msra.mxu0 0.0
    %610 = vmatprep.subr.mxu0 0.0
    %611 = vmatpush1.msra.mxu0 0.0
    %612 = vmatprep.subr.mxu0 0.0
    %613 = vmatpush1.msra.mxu0 0.0
    %614 = vmatprep.subr.mxu0 0.0
    %615 = vmatpush1.msra.mxu0 0.0
    %616 = vmatprep.subr.mxu0 0.0
    %617 = vmatpush1.msra.mxu0 0.0
    %618 = vmatprep.mubr.f32.mxu0 0.0
    %619 = vmatmul.mubr.f32.gmra.mrb[0].mxu0 %v457
    %v620 = vpop.f32.mrb[0].mxu0
    %v621 = vadd.f32 %v552, %v620
    %v622 = vpop.f32.mrb[0].mxu0
    %623 = vdwg.mxu0
    %v624 = vtanh.pop %v621
    %625 = vmatprep.subr.mxu0 0.0
    %626 = vmatpush1.msra.mxu0 %v530
    %627 = vmatprep.subr.mxu0 0.0
    %628 = vmatpush1.msra.mxu0 %v531
    %629 = vmatprep.subr.mxu0 0.0
    %630 = vmatpush1.msra.mxu0 %v532
    %631 = vmatprep.subr.mxu0 0.0
    %632 = vmatpush1.msra.mxu0 %v533
    %633 = vmatprep.subr.mxu0 0.0
    %634 = vmatpush1.msra.mxu0 %v534
    %635 = vmatprep.subr.mxu0 0.0
    %636 = vmatpush1.msra.mxu0 %v535
    %637 = vmatprep.subr.mxu0 0.0
    %638 = vmatpush1.msra.mxu0 %v536
    %639 = vmatprep.subr.mxu0 0.0
    %640 = vmatpush1.msra.mxu0 %v537
    %641 = vmatprep.subr.mxu0 0.0
    %642 = vmatpush1.msra.mxu0 %v538
    %643 = vmatprep.subr.mxu0 0.0
    %644 = vmatpush1.msra.mxu0 %v539
    %645 = vmatprep.subr.mxu0 0.0
    %646 = vmatpush1.msra.mxu0 %v540
    %647 = vmatprep.subr.mxu0 0.0
    %648 = vmatpush1.msra.mxu0 %v541
    %649 = vmatprep.subr.mxu0 0.0
    %650 = vmatpush1.msra.mxu0 %v542
    %651 = vmatprep.subr.mxu0 0.0
    %652 = vmatpush1.msra.mxu0 %v543
    %653 = vmatprep.subr.mxu0 0.0
    %654 = vmatpush1.msra.mxu0 %v544
    %655 = vmatprep.subr.mxu0 0.0
    %656 = vmatpush1.msra.mxu0 %v545
    %657 = vmatprep.subr.mxu0 0.0
    %658 = vmatpush1.msra.mxu0 0.0
    %659 = vmatprep.subr.mxu0 0.0
    %660 = vmatpush1.msra.mxu0 0.0
    %661 = vmatprep.subr.mxu0 0.0
    %662 = vmatpush1.msra.mxu0 0.0
    %663 = vmatprep.subr.mxu0 0.0
    %664 = vmatpush1.msra.mxu0 0.0
    %665 = vmatprep.subr.mxu0 0.0
    %666 = vmatpush1.msra.mxu0 0.0
    %667 = vmatprep.subr.mxu0 0.0
    %668 = vmatpush1.msra.mxu0 0.0
    %669 = vmatprep.subr.mxu0 0.0
    %670 = vmatpush1.msra.mxu0 0.0
    %671 = vmatprep.subr.mxu0 0.0
    %672 = vmatpush1.msra.mxu0 0.0
    %673 = vmatprep.subr.mxu0 0.0
    %674 = vmatpush1.msra.mxu0 0.0
    %675 = vmatprep.subr.mxu0 0.0
    %676 = vmatpush1.msra.mxu0 0.0
    %677 = vmatprep.subr.mxu0 0.0
    %678 = vmatpush1.msra.mxu0 0.0
    %679 = vmatprep.subr.mxu0 0.0
    %680 = vmatpush1.msra.mxu0 0.0
    %681 = vmatprep.subr.mxu0 0.0
    %682 = vmatpush1.msra.mxu0 0.0
    %683 = vmatprep.subr.mxu0 0.0
    %684 = vmatpush1.msra.mxu0 0.0
    %685 = vmatprep.subr.mxu0 0.0
    %686 = vmatpush1.msra.mxu0 0.0
    %687 = vmatprep.subr.mxu0 0.0
    %688 = vmatpush1.msra.mxu0 0.0
    %689 = vmatprep.mubr.f32.mxu0 0.0
    %690 = vmatmul.mubr.f32.gmra.mrb[0].mxu0 %v528
    %v691 = vpop.f32.mrb[0].mxu0
    %v692 = vadd.f32 %v552, %v691
    %v693 = vpop.f32.mrb[0].mxu0
    %694 = vdwg.mxu0
    %v695 = vtanh.pop %v692
    %s696 = scalar_lea.vmem [#allocation2], 512
    %v697 = vld [vmem:[%s696] sm:$0xff]
    %v698 = vld [vmem:[%s696 + $0x8] sm:$0xff]
    %v699 = vld [vmem:[%s696 + $0x10] sm:$0xff]
    %v700 = vld [vmem:[%s696 + $0x18] sm:$0xff]
    %v701 = vld [vmem:[%s696 + $0x20] sm:$0xff]
    %v702 = vld [vmem:[%s696 + $0x28] sm:$0xff]
    %v703 = vld [vmem:[%s696 + $0x30] sm:$0xff]
    %v704 = vld [vmem:[%s696 + $0x38] sm:$0xff]
    %v705 = vld [vmem:[%s696 + $0x40] sm:$0xff]
    %v706 = vld [vmem:[%s696 + $0x48] sm:$0xff]
    %v707 = vld [vmem:[%s696 + $0x50] sm:$0xff]
    %v708 = vld [vmem:[%s696 + $0x58] sm:$0xff]
    %v709 = vld [vmem:[%s696 + $0x60] sm:$0xff]
    %v710 = vld [vmem:[%s696 + $0x68] sm:$0xff]
    %v711 = vld [vmem:[%s696 + $0x70] sm:$0xff]
    %v712 = vld [vmem:[%s696 + $0x78] sm:$0xff]
    %s713 = scalar_lea.vmem %s2, 4
    %v714 = vld [vmem:[%s713] sm:$0x1]
    %v716 = vlaneseq
    %v717 = vshrl.u32 %v716, 7
    %v718 = vsub.s32 0, %v717
    %v719 = vrot.slane %v714, %v718
    %721 = vmatprep.subr.mxu0 0.0
    %722 = vmatpush1.msra.mxu0 %v697
    %723 = vmatprep.subr.mxu0 0.0
    %724 = vmatpush1.msra.mxu0 %v698
    %725 = vmatprep.subr.mxu0 0.0
    %726 = vmatpush1.msra.mxu0 %v699
    %727 = vmatprep.subr.mxu0 0.0
    %728 = vmatpush1.msra.mxu0 %v700
    %729 = vmatprep.subr.mxu0 0.0
    %730 = vmatpush1.msra.mxu0 %v701
    %731 = vmatprep.subr.mxu0 0.0
    %732 = vmatpush1.msra.mxu0 %v702
    %733 = vmatprep.subr.mxu0 0.0
    %734 = vmatpush1.msra.mxu0 %v703
    %735 = vmatprep.subr.mxu0 0.0
    %736 = vmatpush1.msra.mxu0 %v704
    %737 = vmatprep.subr.mxu0 0.0
    %738 = vmatpush1.msra.mxu0 %v705
    %739 = vmatprep.subr.mxu0 0.0
    %740 = vmatpush1.msra.mxu0 %v706
    %741 = vmatprep.subr.mxu0 0.0
    %742 = vmatpush1.msra.mxu0 %v707
    %743 = vmatprep.subr.mxu0 0.0
    %744 = vmatpush1.msra.mxu0 %v708
    %745 = vmatprep.subr.mxu0 0.0
    %746 = vmatpush1.msra.mxu0 %v709
    %747 = vmatprep.subr.mxu0 0.0
    %748 = vmatpush1.msra.mxu0 %v710
    %749 = vmatprep.subr.mxu0 0.0
    %750 = vmatpush1.msra.mxu0 %v711
    %751 = vmatprep.subr.mxu0 0.0
    %752 = vmatpush1.msra.mxu0 %v712
    %753 = vmatprep.subr.mxu0 0.0
    %754 = vmatpush1.msra.mxu0 0.0
    %755 = vmatprep.subr.mxu0 0.0
    %756 = vmatpush1.msra.mxu0 0.0
    %757 = vmatprep.subr.mxu0 0.0
    %758 = vmatpush1.msra.mxu0 0.0
    %759 = vmatprep.subr.mxu0 0.0
    %760 = vmatpush1.msra.mxu0 0.0
    %761 = vmatprep.subr.mxu0 0.0
    %762 = vmatpush1.msra.mxu0 0.0
    %763 = vmatprep.subr.mxu0 0.0
    %764 = vmatpush1.msra.mxu0 0.0
    %765 = vmatprep.subr.mxu0 0.0
    %766 = vmatpush1.msra.mxu0 0.0
    %767 = vmatprep.subr.mxu0 0.0
    %768 = vmatpush1.msra.mxu0 0.0
    %769 = vmatprep.subr.mxu0 0.0
    %770 = vmatpush1.msra.mxu0 0.0
    %771 = vmatprep.subr.mxu0 0.0
    %772 = vmatpush1.msra.mxu0 0.0
    %773 = vmatprep.subr.mxu0 0.0
    %774 = vmatpush1.msra.mxu0 0.0
    %775 = vmatprep.subr.mxu0 0.0
    %776 = vmatpush1.msra.mxu0 0.0
    %777 = vmatprep.subr.mxu0 0.0
    %778 = vmatpush1.msra.mxu0 0.0
    %779 = vmatprep.subr.mxu0 0.0
    %780 = vmatpush1.msra.mxu0 0.0
    %781 = vmatprep.subr.mxu0 0.0
    %782 = vmatpush1.msra.mxu0 0.0
    %783 = vmatprep.subr.mxu0 0.0
    %784 = vmatpush1.msra.mxu0 0.0
    %785 = vmatprep.mubr.f32.mxu0 0.0
    %786 = vmatmul.mubr.f32.gmra.mrb[0].mxu0 %v624
    %v787 = vpop.f32.mrb[0].mxu0
    %v788 = vadd.f32 %v719, %v787
    %v789 = vpop.f32.mrb[0].mxu0
    %790 = vdwg.mxu0
    %v791 = vtanh.pop %v788
    %792 = vmatprep.subr.mxu0 0.0
    %793 = vmatpush1.msra.mxu0 %v697
    %794 = vmatprep.subr.mxu0 0.0
    %795 = vmatpush1.msra.mxu0 %v698
    %796 = vmatprep.subr.mxu0 0.0
    %797 = vmatpush1.msra.mxu0 %v699
    %798 = vmatprep.subr.mxu0 0.0
    %799 = vmatpush1.msra.mxu0 %v700
    %800 = vmatprep.subr.mxu0 0.0
    %801 = vmatpush1.msra.mxu0 %v701
    %802 = vmatprep.subr.mxu0 0.0
    %803 = vmatpush1.msra.mxu0 %v702
    %804 = vmatprep.subr.mxu0 0.0
    %805 = vmatpush1.msra.mxu0 %v703
    %806 = vmatprep.subr.mxu0 0.0
    %807 = vmatpush1.msra.mxu0 %v704
    %808 = vmatprep.subr.mxu0 0.0
    %809 = vmatpush1.msra.mxu0 %v705
    %810 = vmatprep.subr.mxu0 0.0
    %811 = vmatpush1.msra.mxu0 %v706
    %812 = vmatprep.subr.mxu0 0.0
    %813 = vmatpush1.msra.mxu0 %v707
    %814 = vmatprep.subr.mxu0 0.0
    %815 = vmatpush1.msra.mxu0 %v708
    %816 = vmatprep.subr.mxu0 0.0
    %817 = vmatpush1.msra.mxu0 %v709
    %818 = vmatprep.subr.mxu0 0.0
    %819 = vmatpush1.msra.mxu0 %v710
    %820 = vmatprep.subr.mxu0 0.0
    %821 = vmatpush1.msra.mxu0 %v711
    %822 = vmatprep.subr.mxu0 0.0
    %823 = vmatpush1.msra.mxu0 %v712
    %824 = vmatprep.subr.mxu0 0.0
    %825 = vmatpush1.msra.mxu0 0.0
    %826 = vmatprep.subr.mxu0 0.0
    %827 = vmatpush1.msra.mxu0 0.0
    %828 = vmatprep.subr.mxu0 0.0
    %829 = vmatpush1.msra.mxu0 0.0
    %830 = vmatprep.subr.mxu0 0.0
    %831 = vmatpush1.msra.mxu0 0.0
    %832 = vmatprep.subr.mxu0 0.0
    %833 = vmatpush1.msra.mxu0 0.0
    %834 = vmatprep.subr.mxu0 0.0
    %835 = vmatpush1.msra.mxu0 0.0
    %836 = vmatprep.subr.mxu0 0.0
    %837 = vmatpush1.msra.mxu0 0.0
    %838 = vmatprep.subr.mxu0 0.0
    %839 = vmatpush1.msra.mxu0 0.0
    %840 = vmatprep.subr.mxu0 0.0
    %841 = vmatpush1.msra.mxu0 0.0
    %842 = vmatprep.subr.mxu0 0.0
    %843 = vmatpush1.msra.mxu0 0.0
    %844 = vmatprep.subr.mxu0 0.0
    %845 = vmatpush1.msra.mxu0 0.0
    %846 = vmatprep.subr.mxu0 0.0
    %847 = vmatpush1.msra.mxu0 0.0
    %848 = vmatprep.subr.mxu0 0.0
    %849 = vmatpush1.msra.mxu0 0.0
    %850 = vmatprep.subr.mxu0 0.0
    %851 = vmatpush1.msra.mxu0 0.0
    %852 = vmatprep.subr.mxu0 0.0
    %853 = vmatpush1.msra.mxu0 0.0
    %854 = vmatprep.subr.mxu0 0.0
    %855 = vmatpush1.msra.mxu0 0.0
    %856 = vmatprep.mubr.f32.mxu0 0.0
    %857 = vmatmul.mubr.f32.gmra.mrb[0].mxu0 %v695
    %v858 = vpop.f32.mrb[0].mxu0
    %v859 = vadd.f32 %v719, %v858
    %v860 = vpop.f32.mrb[0].mxu0
    %861 = vdwg.mxu0
    %v862 = vtanh.pop %v859
    %s863 = scalar_lea.vmem [#allocation2], 640
    %v864 = vld [vmem:[%s863] sm:$0xff]
    %v865 = vld [vmem:[%s863 + $0x8] sm:$0xff]
    %v866 = vld [vmem:[%s863 + $0x10] sm:$0xff]
    %v867 = vld [vmem:[%s863 + $0x18] sm:$0xff]
    %v868 = vld [vmem:[%s863 + $0x20] sm:$0xff]
    %v869 = vld [vmem:[%s863 + $0x28] sm:$0xff]
    %v870 = vld [vmem:[%s863 + $0x30] sm:$0xff]
    %v871 = vld [vmem:[%s863 + $0x38] sm:$0xff]
    %v872 = vld [vmem:[%s863 + $0x40] sm:$0xff]
    %v873 = vld [vmem:[%s863 + $0x48] sm:$0xff]
    %v874 = vld [vmem:[%s863 + $0x50] sm:$0xff]
    %v875 = vld [vmem:[%s863 + $0x58] sm:$0xff]
    %v876 = vld [vmem:[%s863 + $0x60] sm:$0xff]
    %v877 = vld [vmem:[%s863 + $0x68] sm:$0xff]
    %v878 = vld [vmem:[%s863 + $0x70] sm:$0xff]
    %v879 = vld [vmem:[%s863 + $0x78] sm:$0xff]
    %s880 = scalar_lea.vmem %s2, 5
    %v881 = vld [vmem:[%s880] sm:$0x1]
    %v883 = vlaneseq
    %v884 = vshrl.u32 %v883, 7
    %v885 = vsub.s32 0, %v884
    %v886 = vrot.slane %v881, %v885
    %888 = vmatprep.subr.mxu0 0.0
    %889 = vmatpush1.msra.mxu0 %v864
    %890 = vmatprep.subr.mxu0 0.0
    %891 = vmatpush1.msra.mxu0 %v865
    %892 = vmatprep.subr.mxu0 0.0
    %893 = vmatpush1.msra.mxu0 %v866
    %894 = vmatprep.subr.mxu0 0.0
    %895 = vmatpush1.msra.mxu0 %v867
    %896 = vmatprep.subr.mxu0 0.0
    %897 = vmatpush1.msra.mxu0 %v868
    %898 = vmatprep.subr.mxu0 0.0
    %899 = vmatpush1.msra.mxu0 %v869
    %900 = vmatprep.subr.mxu0 0.0
    %901 = vmatpush1.msra.mxu0 %v870
    %902 = vmatprep.subr.mxu0 0.0
    %903 = vmatpush1.msra.mxu0 %v871
    %904 = vmatprep.subr.mxu0 0.0
    %905 = vmatpush1.msra.mxu0 %v872
    %906 = vmatprep.subr.mxu0 0.0
    %907 = vmatpush1.msra.mxu0 %v873
    %908 = vmatprep.subr.mxu0 0.0
    %909 = vmatpush1.msra.mxu0 %v874
    %910 = vmatprep.subr.mxu0 0.0
    %911 = vmatpush1.msra.mxu0 %v875
    %912 = vmatprep.subr.mxu0 0.0
    %913 = vmatpush1.msra.mxu0 %v876
    %914 = vmatprep.subr.mxu0 0.0
    %915 = vmatpush1.msra.mxu0 %v877
    %916 = vmatprep.subr.mxu0 0.0
    %917 = vmatpush1.msra.mxu0 %v878
    %918 = vmatprep.subr.mxu0 0.0
    %919 = vmatpush1.msra.mxu0 %v879
    %920 = vmatprep.subr.mxu0 0.0
    %921 = vmatpush1.msra.mxu0 0.0
    %922 = vmatprep.subr.mxu0 0.0
    %923 = vmatpush1.msra.mxu0 0.0
    %924 = vmatprep.subr.mxu0 0.0
    %925 = vmatpush1.msra.mxu0 0.0
    %926 = vmatprep.subr.mxu0 0.0
    %927 = vmatpush1.msra.mxu0 0.0
    %928 = vmatprep.subr.mxu0 0.0
    %929 = vmatpush1.msra.mxu0 0.0
    %930 = vmatprep.subr.mxu0 0.0
    %931 = vmatpush1.msra.mxu0 0.0
    %932 = vmatprep.subr.mxu0 0.0
    %933 = vmatpush1.msra.mxu0 0.0
    %934 = vmatprep.subr.mxu0 0.0
    %935 = vmatpush1.msra.mxu0 0.0
    %936 = vmatprep.subr.mxu0 0.0
    %937 = vmatpush1.msra.mxu0 0.0
    %938 = vmatprep.subr.mxu0 0.0
    %939 = vmatpush1.msra.mxu0 0.0
    %940 = vmatprep.subr.mxu0 0.0
    %941 = vmatpush1.msra.mxu0 0.0
    %942 = vmatprep.subr.mxu0 0.0
    %943 = vmatpush1.msra.mxu0 0.0
    %944 = vmatprep.subr.mxu0 0.0
    %945 = vmatpush1.msra.mxu0 0.0
    %946 = vmatprep.subr.mxu0 0.0
    %947 = vmatpush1.msra.mxu0 0.0
    %948 = vmatprep.subr.mxu0 0.0
    %949 = vmatpush1.msra.mxu0 0.0
    %950 = vmatprep.subr.mxu0 0.0
    %951 = vmatpush1.msra.mxu0 0.0
    %952 = vmatprep.mubr.f32.mxu0 0.0
    %953 = vmatmul.mubr.f32.gmra.mrb[0].mxu0 %v791
    %v954 = vpop.f32.mrb[0].mxu0
    %v955 = vadd.f32 %v886, %v954
    %v956 = vpop.f32.mrb[0].mxu0
    %957 = vdwg.mxu0
    %v958 = vtanh.pop %v955
    %959 = vmatprep.subr.mxu0 0.0
    %960 = vmatpush1.msra.mxu0 %v864
    %961 = vmatprep.subr.mxu0 0.0
    %962 = vmatpush1.msra.mxu0 %v865
    %963 = vmatprep.subr.mxu0 0.0
    %964 = vmatpush1.msra.mxu0 %v866
    %965 = vmatprep.subr.mxu0 0.0
    %966 = vmatpush1.msra.mxu0 %v867
    %967 = vmatprep.subr.mxu0 0.0
    %968 = vmatpush1.msra.mxu0 %v868
    %969 = vmatprep.subr.mxu0 0.0
    %970 = vmatpush1.msra.mxu0 %v869
    %971 = vmatprep.subr.mxu0 0.0
    %972 = vmatpush1.msra.mxu0 %v870
    %973 = vmatprep.subr.mxu0 0.0
    %974 = vmatpush1.msra.mxu0 %v871
    %975 = vmatprep.subr.mxu0 0.0
    %976 = vmatpush1.msra.mxu0 %v872
    %977 = vmatprep.subr.mxu0 0.0
    %978 = vmatpush1.msra.mxu0 %v873
    %979 = vmatprep.subr.mxu0 0.0
    %980 = vmatpush1.msra.mxu0 %v874
    %981 = vmatprep.subr.mxu0 0.0
    %982 = vmatpush1.msra.mxu0 %v875
    %983 = vmatprep.subr.mxu0 0.0
    %984 = vmatpush1.msra.mxu0 %v876
    %985 = vmatprep.subr.mxu0 0.0
    %986 = vmatpush1.msra.mxu0 %v877
    %987 = vmatprep.subr.mxu0 0.0
    %988 = vmatpush1.msra.mxu0 %v878
    %989 = vmatprep.subr.mxu0 0.0
    %990 = vmatpush1.msra.mxu0 %v879
    %991 = vmatprep.subr.mxu0 0.0
    %992 = vmatpush1.msra.mxu0 0.0
    %993 = vmatprep.subr.mxu0 0.0
    %994 = vmatpush1.msra.mxu0 0.0
    %995 = vmatprep.subr.mxu0 0.0
    %996 = vmatpush1.msra.mxu0 0.0
    %997 = vmatprep.subr.mxu0 0.0
    %998 = vmatpush1.msra.mxu0 0.0
    %999 = vmatprep.subr.mxu0 0.0
    %1000 = vmatpush1.msra.mxu0 0.0
    %1001 = vmatprep.subr.mxu0 0.0
    %1002 = vmatpush1.msra.mxu0 0.0
    %1003 = vmatprep.subr.mxu0 0.0
    %1004 = vmatpush1.msra.mxu0 0.0
    %1005 = vmatprep.subr.mxu0 0.0
    %1006 = vmatpush1.msra.mxu0 0.0
    %1007 = vmatprep.subr.mxu0 0.0
    %1008 = vmatpush1.msra.mxu0 0.0
    %1009 = vmatprep.subr.mxu0 0.0
    %1010 = vmatpush1.msra.mxu0 0.0
    %1011 = vmatprep.subr.mxu0 0.0
    %1012 = vmatpush1.msra.mxu0 0.0
    %1013 = vmatprep.subr.mxu0 0.0
    %1014 = vmatpush1.msra.mxu0 0.0
    %1015 = vmatprep.subr.mxu0 0.0
    %1016 = vmatpush1.msra.mxu0 0.0
    %1017 = vmatprep.subr.mxu0 0.0
    %1018 = vmatpush1.msra.mxu0 0.0
    %1019 = vmatprep.subr.mxu0 0.0
    %1020 = vmatpush1.msra.mxu0 0.0
    %1021 = vmatprep.subr.mxu0 0.0
    %1022 = vmatpush1.msra.mxu0 0.0
    %1023 = vmatprep.mubr.f32.mxu0 0.0
    %1024 = vmatmul.mubr.f32.gmra.mrb[0].mxu0 %v862
    %v1025 = vpop.f32.mrb[0].mxu0
    %v1026 = vadd.f32 %v886, %v1025
    %v1027 = vpop.f32.mrb[0].mxu0
    %1028 = vdwg.mxu0
    %v1029 = vtanh.pop %v1026
    %s1030 = scalar_lea.vmem [#allocation2], 768
    %v1031 = vld [vmem:[%s1030] sm:$0xff]
    %v1032 = vld [vmem:[%s1030 + $0x8] sm:$0xff]
    %v1033 = vld [vmem:[%s1030 + $0x10] sm:$0xff]
    %v1034 = vld [vmem:[%s1030 + $0x18] sm:$0xff]
    %v1035 = vld [vmem:[%s1030 + $0x20] sm:$0xff]
    %v1036 = vld [vmem:[%s1030 + $0x28] sm:$0xff]
    %v1037 = vld [vmem:[%s1030 + $0x30] sm:$0xff]
    %v1038 = vld [vmem:[%s1030 + $0x38] sm:$0xff]
    %v1039 = vld [vmem:[%s1030 + $0x40] sm:$0xff]
    %v1040 = vld [vmem:[%s1030 + $0x48] sm:$0xff]
    %v1041 = vld [vmem:[%s1030 + $0x50] sm:$0xff]
    %v1042 = vld [vmem:[%s1030 + $0x58] sm:$0xff]
    %v1043 = vld [vmem:[%s1030 + $0x60] sm:$0xff]
    %v1044 = vld [vmem:[%s1030 + $0x68] sm:$0xff]
    %v1045 = vld [vmem:[%s1030 + $0x70] sm:$0xff]
    %v1046 = vld [vmem:[%s1030 + $0x78] sm:$0xff]
    %s1047 = scalar_lea.vmem %s2, 6
    %v1048 = vld [vmem:[%s1047] sm:$0x1]
    %v1050 = vlaneseq
    %v1051 = vshrl.u32 %v1050, 7
    %v1052 = vsub.s32 0, %v1051
    %v1053 = vrot.slane %v1048, %v1052
    %1055 = vmatprep.subr.mxu0 0.0
    %1056 = vmatpush1.msra.mxu0 %v1031
    %1057 = vmatprep.subr.mxu0 0.0
    %1058 = vmatpush1.msra.mxu0 %v1032
    %1059 = vmatprep.subr.mxu0 0.0
    %1060 = vmatpush1.msra.mxu0 %v1033
    %1061 = vmatprep.subr.mxu0 0.0
    %1062 = vmatpush1.msra.mxu0 %v1034
    %1063 = vmatprep.subr.mxu0 0.0
    %1064 = vmatpush1.msra.mxu0 %v1035
    %1065 = vmatprep.subr.mxu0 0.0
    %1066 = vmatpush1.msra.mxu0 %v1036
    %1067 = vmatprep.subr.mxu0 0.0
    %1068 = vmatpush1.msra.mxu0 %v1037
    %1069 = vmatprep.subr.mxu0 0.0
    %1070 = vmatpush1.msra.mxu0 %v1038
    %1071 = vmatprep.subr.mxu0 0.0
    %1072 = vmatpush1.msra.mxu0 %v1039
    %1073 = vmatprep.subr.mxu0 0.0
    %1074 = vmatpush1.msra.mxu0 %v1040
    %1075 = vmatprep.subr.mxu0 0.0
    %1076 = vmatpush1.msra.mxu0 %v1041
    %1077 = vmatprep.subr.mxu0 0.0
    %1078 = vmatpush1.msra.mxu0 %v1042
    %1079 = vmatprep.subr.mxu0 0.0
    %1080 = vmatpush1.msra.mxu0 %v1043
    %1081 = vmatprep.subr.mxu0 0.0
    %1082 = vmatpush1.msra.mxu0 %v1044
    %1083 = vmatprep.subr.mxu0 0.0
    %1084 = vmatpush1.msra.mxu0 %v1045
    %1085 = vmatprep.subr.mxu0 0.0
    %1086 = vmatpush1.msra.mxu0 %v1046
    %1087 = vmatprep.subr.mxu0 0.0
    %1088 = vmatpush1.msra.mxu0 0.0
    %1089 = vmatprep.subr.mxu0 0.0
    %1090 = vmatpush1.msra.mxu0 0.0
    %1091 = vmatprep.subr.mxu0 0.0
    %1092 = vmatpush1.msra.mxu0 0.0
    %1093 = vmatprep.subr.mxu0 0.0
    %1094 = vmatpush1.msra.mxu0 0.0
    %1095 = vmatprep.subr.mxu0 0.0
    %1096 = vmatpush1.msra.mxu0 0.0
    %1097 = vmatprep.subr.mxu0 0.0
    %1098 = vmatpush1.msra.mxu0 0.0
    %1099 = vmatprep.subr.mxu0 0.0
    %1100 = vmatpush1.msra.mxu0 0.0
    %1101 = vmatprep.subr.mxu0 0.0
    %1102 = vmatpush1.msra.mxu0 0.0
    %1103 = vmatprep.subr.mxu0 0.0
    %1104 = vmatpush1.msra.mxu0 0.0
    %1105 = vmatprep.subr.mxu0 0.0
    %1106 = vmatpush1.msra.mxu0 0.0
    %1107 = vmatprep.subr.mxu0 0.0
    %1108 = vmatpush1.msra.mxu0 0.0
    %1109 = vmatprep.subr.mxu0 0.0
    %1110 = vmatpush1.msra.mxu0 0.0
    %1111 = vmatprep.subr.mxu0 0.0
    %1112 = vmatpush1.msra.mxu0 0.0
    %1113 = vmatprep.subr.mxu0 0.0
    %1114 = vmatpush1.msra.mxu0 0.0
    %1115 = vmatprep.subr.mxu0 0.0
    %1116 = vmatpush1.msra.mxu0 0.0
    %1117 = vmatprep.subr.mxu0 0.0
    %1118 = vmatpush1.msra.mxu0 0.0
    %1119 = vmatprep.mubr.f32.mxu0 0.0
    %1120 = vmatmul.mubr.f32.gmra.mrb[0].mxu0 %v958
    %v1121 = vpop.f32.mrb[0].mxu0
    %v1122 = vadd.f32 %v1053, %v1121
    %v1123 = vpop.f32.mrb[0].mxu0
    %1124 = vdwg.mxu0
    %v1125 = vtanh.pop %v1122
    %1126 = vmatprep.subr.mxu0 0.0
    %1127 = vmatpush1.msra.mxu0 %v1031
    %1128 = vmatprep.subr.mxu0 0.0
    %1129 = vmatpush1.msra.mxu0 %v1032
    %1130 = vmatprep.subr.mxu0 0.0
    %1131 = vmatpush1.msra.mxu0 %v1033
    %1132 = vmatprep.subr.mxu0 0.0
    %1133 = vmatpush1.msra.mxu0 %v1034
    %1134 = vmatprep.subr.mxu0 0.0
    %1135 = vmatpush1.msra.mxu0 %v1035
    %1136 = vmatprep.subr.mxu0 0.0
    %1137 = vmatpush1.msra.mxu0 %v1036
    %1138 = vmatprep.subr.mxu0 0.0
    %1139 = vmatpush1.msra.mxu0 %v1037
    %1140 = vmatprep.subr.mxu0 0.0
    %1141 = vmatpush1.msra.mxu0 %v1038
    %1142 = vmatprep.subr.mxu0 0.0
    %1143 = vmatpush1.msra.mxu0 %v1039
    %1144 = vmatprep.subr.mxu0 0.0
    %1145 = vmatpush1.msra.mxu0 %v1040
    %1146 = vmatprep.subr.mxu0 0.0
    %1147 = vmatpush1.msra.mxu0 %v1041
    %1148 = vmatprep.subr.mxu0 0.0
    %1149 = vmatpush1.msra.mxu0 %v1042
    %1150 = vmatprep.subr.mxu0 0.0
    %1151 = vmatpush1.msra.mxu0 %v1043
    %1152 = vmatprep.subr.mxu0 0.0
    %1153 = vmatpush1.msra.mxu0 %v1044
    %1154 = vmatprep.subr.mxu0 0.0
    %1155 = vmatpush1.msra.mxu0 %v1045
    %1156 = vmatprep.subr.mxu0 0.0
    %1157 = vmatpush1.msra.mxu0 %v1046
    %1158 = vmatprep.subr.mxu0 0.0
    %1159 = vmatpush1.msra.mxu0 0.0
    %1160 = vmatprep.subr.mxu0 0.0
    %1161 = vmatpush1.msra.mxu0 0.0
    %1162 = vmatprep.subr.mxu0 0.0
    %1163 = vmatpush1.msra.mxu0 0.0
    %1164 = vmatprep.subr.mxu0 0.0
    %1165 = vmatpush1.msra.mxu0 0.0
    %1166 = vmatprep.subr.mxu0 0.0
    %1167 = vmatpush1.msra.mxu0 0.0
    %1168 = vmatprep.subr.mxu0 0.0
    %1169 = vmatpush1.msra.mxu0 0.0
    %1170 = vmatprep.subr.mxu0 0.0
    %1171 = vmatpush1.msra.mxu0 0.0
    %1172 = vmatprep.subr.mxu0 0.0
    %1173 = vmatpush1.msra.mxu0 0.0
    %1174 = vmatprep.subr.mxu0 0.0
    %1175 = vmatpush1.msra.mxu0 0.0
    %1176 = vmatprep.subr.mxu0 0.0
    %1177 = vmatpush1.msra.mxu0 0.0
    %1178 = vmatprep.subr.mxu0 0.0
    %1179 = vmatpush1.msra.mxu0 0.0
    %1180 = vmatprep.subr.mxu0 0.0
    %1181 = vmatpush1.msra.mxu0 0.0
    %1182 = vmatprep.subr.mxu0 0.0
    %1183 = vmatpush1.msra.mxu0 0.0
    %1184 = vmatprep.subr.mxu0 0.0
    %1185 = vmatpush1.msra.mxu0 0.0
    %1186 = vmatprep.subr.mxu0 0.0
    %1187 = vmatpush1.msra.mxu0 0.0
    %1188 = vmatprep.subr.mxu0 0.0
    %1189 = vmatpush1.msra.mxu0 0.0
    %1190 = vmatprep.mubr.f32.mxu0 0.0
    %1191 = vmatmul.mubr.f32.gmra.mrb[0].mxu0 %v1029
    %v1192 = vpop.f32.mrb[0].mxu0
    %v1193 = vadd.f32 %v1053, %v1192
    %v1194 = vpop.f32.mrb[0].mxu0
    %1195 = vdwg.mxu0
    %v1196 = vtanh.pop %v1193
    %s1197 = scalar_lea.vmem [#allocation2], 896
    %v1198 = vld [vmem:[%s1197] sm:$0xff]
    %v1199 = vld [vmem:[%s1197 + $0x8] sm:$0xff]
    %v1200 = vld [vmem:[%s1197 + $0x10] sm:$0xff]
    %v1201 = vld [vmem:[%s1197 + $0x18] sm:$0xff]
    %v1202 = vld [vmem:[%s1197 + $0x20] sm:$0xff]
    %v1203 = vld [vmem:[%s1197 + $0x28] sm:$0xff]
    %v1204 = vld [vmem:[%s1197 + $0x30] sm:$0xff]
    %v1205 = vld [vmem:[%s1197 + $0x38] sm:$0xff]
    %v1206 = vld [vmem:[%s1197 + $0x40] sm:$0xff]
    %v1207 = vld [vmem:[%s1197 + $0x48] sm:$0xff]
    %v1208 = vld [vmem:[%s1197 + $0x50] sm:$0xff]
    %v1209 = vld [vmem:[%s1197 + $0x58] sm:$0xff]
    %v1210 = vld [vmem:[%s1197 + $0x60] sm:$0xff]
    %v1211 = vld [vmem:[%s1197 + $0x68] sm:$0xff]
    %v1212 = vld [vmem:[%s1197 + $0x70] sm:$0xff]
    %v1213 = vld [vmem:[%s1197 + $0x78] sm:$0xff]
    %s1214 = scalar_lea.vmem %s2, 7
    %v1215 = vld [vmem:[%s1214] sm:$0x1]
    %v1217 = vlaneseq
    %v1218 = vshrl.u32 %v1217, 7
    %v1219 = vsub.s32 0, %v1218
    %v1220 = vrot.slane %v1215, %v1219
    %1222 = vmatprep.subr.mxu0 0.0
    %1223 = vmatpush1.msra.mxu0 %v1198
    %1224 = vmatprep.subr.mxu0 0.0
    %1225 = vmatpush1.msra.mxu0 %v1199
    %1226 = vmatprep.subr.mxu0 0.0
    %1227 = vmatpush1.msra.mxu0 %v1200
    %1228 = vmatprep.subr.mxu0 0.0
    %1229 = vmatpush1.msra.mxu0 %v1201
    %1230 = vmatprep.subr.mxu0 0.0
    %1231 = vmatpush1.msra.mxu0 %v1202
    %1232 = vmatprep.subr.mxu0 0.0
    %1233 = vmatpush1.msra.mxu0 %v1203
    %1234 = vmatprep.subr.mxu0 0.0
    %1235 = vmatpush1.msra.mxu0 %v1204
    %1236 = vmatprep.subr.mxu0 0.0
    %1237 = vmatpush1.msra.mxu0 %v1205
    %1238 = vmatprep.subr.mxu0 0.0
    %1239 = vmatpush1.msra.mxu0 %v1206
    %1240 = vmatprep.subr.mxu0 0.0
    %1241 = vmatpush1.msra.mxu0 %v1207
    %1242 = vmatprep.subr.mxu0 0.0
    %1243 = vmatpush1.msra.mxu0 %v1208
    %1244 = vmatprep.subr.mxu0 0.0
    %1245 = vmatpush1.msra.mxu0 %v1209
    %1246 = vmatprep.subr.mxu0 0.0
    %1247 = vmatpush1.msra.mxu0 %v1210
    %1248 = vmatprep.subr.mxu0 0.0
    %1249 = vmatpush1.msra.mxu0 %v1211
    %1250 = vmatprep.subr.mxu0 0.0
    %1251 = vmatpush1.msra.mxu0 %v1212
    %1252 = vmatprep.subr.mxu0 0.0
    %1253 = vmatpush1.msra.mxu0 %v1213
    %1254 = vmatprep.subr.mxu0 0.0
    %1255 = vmatpush1.msra.mxu0 0.0
    %1256 = vmatprep.subr.mxu0 0.0
    %1257 = vmatpush1.msra.mxu0 0.0
    %1258 = vmatprep.subr.mxu0 0.0
    %1259 = vmatpush1.msra.mxu0 0.0
    %1260 = vmatprep.subr.mxu0 0.0
    %1261 = vmatpush1.msra.mxu0 0.0
    %1262 = vmatprep.subr.mxu0 0.0
    %1263 = vmatpush1.msra.mxu0 0.0
    %1264 = vmatprep.subr.mxu0 0.0
    %1265 = vmatpush1.msra.mxu0 0.0
    %1266 = vmatprep.subr.mxu0 0.0
    %1267 = vmatpush1.msra.mxu0 0.0
    %1268 = vmatprep.subr.mxu0 0.0
    %1269 = vmatpush1.msra.mxu0 0.0
    %1270 = vmatprep.subr.mxu0 0.0
    %1271 = vmatpush1.msra.mxu0 0.0
    %1272 = vmatprep.subr.mxu0 0.0
    %1273 = vmatpush1.msra.mxu0 0.0
    %1274 = vmatprep.subr.mxu0 0.0
    %1275 = vmatpush1.msra.mxu0 0.0
    %1276 = vmatprep.subr.mxu0 0.0
    %1277 = vmatpush1.msra.mxu0 0.0
    %1278 = vmatprep.subr.mxu0 0.0
    %1279 = vmatpush1.msra.mxu0 0.0
    %1280 = vmatprep.subr.mxu0 0.0
    %1281 = vmatpush1.msra.mxu0 0.0
    %1282 = vmatprep.subr.mxu0 0.0
    %1283 = vmatpush1.msra.mxu0 0.0
    %1284 = vmatprep.subr.mxu0 0.0
    %1285 = vmatpush1.msra.mxu0 0.0
    %1286 = vmatprep.mubr.f32.mxu0 0.0
    %1287 = vmatmul.mubr.f32.gmra.mrb[0].mxu0 %v1125
    %v1288 = vpop.f32.mrb[0].mxu0
    %v1289 = vadd.f32 %v1220, %v1288
    %v1290 = vpop.f32.mrb[0].mxu0
    %1291 = vdwg.mxu0
    %v1292 = vtanh.pop %v1289
    %1293 = vmatprep.subr.mxu0 0.0
    %1294 = vmatpush1.msra.mxu0 %v1198
    %1295 = vmatprep.subr.mxu0 0.0
    %1296 = vmatpush1.msra.mxu0 %v1199
    %1297 = vmatprep.subr.mxu0 0.0
    %1298 = vmatpush1.msra.mxu0 %v1200
    %1299 = vmatprep.subr.mxu0 0.0
    %1300 = vmatpush1.msra.mxu0 %v1201
    %1301 = vmatprep.subr.mxu0 0.0
    %1302 = vmatpush1.msra.mxu0 %v1202
    %1303 = vmatprep.subr.mxu0 0.0
    %1304 = vmatpush1.msra.mxu0 %v1203
    %1305 = vmatprep.subr.mxu0 0.0
    %1306 = vmatpush1.msra.mxu0 %v1204
    %1307 = vmatprep.subr.mxu0 0.0
    %1308 = vmatpush1.msra.mxu0 %v1205
    %1309 = vmatprep.subr.mxu0 0.0
    %1310 = vmatpush1.msra.mxu0 %v1206
    %1311 = vmatprep.subr.mxu0 0.0
    %1312 = vmatpush1.msra.mxu0 %v1207
    %1313 = vmatprep.subr.mxu0 0.0
    %1314 = vmatpush1.msra.mxu0 %v1208
    %1315 = vmatprep.subr.mxu0 0.0
    %1316 = vmatpush1.msra.mxu0 %v1209
    %1317 = vmatprep.subr.mxu0 0.0
    %1318 = vmatpush1.msra.mxu0 %v1210
    %1319 = vmatprep.subr.mxu0 0.0
    %1320 = vmatpush1.msra.mxu0 %v1211
    %1321 = vmatprep.subr.mxu0 0.0
    %1322 = vmatpush1.msra.mxu0 %v1212
    %1323 = vmatprep.subr.mxu0 0.0
    %1324 = vmatpush1.msra.mxu0 %v1213
    %1325 = vmatprep.subr.mxu0 0.0
    %1326 = vmatpush1.msra.mxu0 0.0
    %1327 = vmatprep.subr.mxu0 0.0
    %1328 = vmatpush1.msra.mxu0 0.0
    %1329 = vmatprep.subr.mxu0 0.0
    %1330 = vmatpush1.msra.mxu0 0.0
    %1331 = vmatprep.subr.mxu0 0.0
    %1332 = vmatpush1.msra.mxu0 0.0
    %1333 = vmatprep.subr.mxu0 0.0
    %1334 = vmatpush1.msra.mxu0 0.0
    %1335 = vmatprep.subr.mxu0 0.0
    %1336 = vmatpush1.msra.mxu0 0.0
    %1337 = vmatprep.subr.mxu0 0.0
    %1338 = vmatpush1.msra.mxu0 0.0
    %1339 = vmatprep.subr.mxu0 0.0
    %1340 = vmatpush1.msra.mxu0 0.0
    %1341 = vmatprep.subr.mxu0 0.0
    %1342 = vmatpush1.msra.mxu0 0.0
    %1343 = vmatprep.subr.mxu0 0.0
    %1344 = vmatpush1.msra.mxu0 0.0
    %1345 = vmatprep.subr.mxu0 0.0
    %1346 = vmatpush1.msra.mxu0 0.0
    %1347 = vmatprep.subr.mxu0 0.0
    %1348 = vmatpush1.msra.mxu0 0.0
    %1349 = vmatprep.subr.mxu0 0.0
    %1350 = vmatpush1.msra.mxu0 0.0
    %1351 = vmatprep.subr.mxu0 0.0
    %1352 = vmatpush1.msra.mxu0 0.0
    %1353 = vmatprep.subr.mxu0 0.0
    %1354 = vmatpush1.msra.mxu0 0.0
    %1355 = vmatprep.subr.mxu0 0.0
    %1356 = vmatpush1.msra.mxu0 0.0
    %1357 = vmatprep.mubr.f32.mxu0 0.0
    %1358 = vmatmul.mubr.f32.gmra.mrb[0].mxu0 %v1196
    %v1359 = vpop.f32.mrb[0].mxu0
    %v1360 = vadd.f32 %v1220, %v1359
    %v1361 = vpop.f32.mrb[0].mxu0
    %1362 = vdwg.mxu0
    %v1363 = vtanh.pop %v1360
    %s1364 = scalar_lea.vmem [#allocation2], 1024
    %v1365 = vld [vmem:[%s1364] sm:$0xff]
    %v1366 = vld [vmem:[%s1364 + $0x8] sm:$0xff]
    %v1367 = vld [vmem:[%s1364 + $0x10] sm:$0xff]
    %v1368 = vld [vmem:[%s1364 + $0x18] sm:$0xff]
    %v1369 = vld [vmem:[%s1364 + $0x20] sm:$0xff]
    %v1370 = vld [vmem:[%s1364 + $0x28] sm:$0xff]
    %v1371 = vld [vmem:[%s1364 + $0x30] sm:$0xff]
    %v1372 = vld [vmem:[%s1364 + $0x38] sm:$0xff]
    %v1373 = vld [vmem:[%s1364 + $0x40] sm:$0xff]
    %v1374 = vld [vmem:[%s1364 + $0x48] sm:$0xff]
    %v1375 = vld [vmem:[%s1364 + $0x50] sm:$0xff]
    %v1376 = vld [vmem:[%s1364 + $0x58] sm:$0xff]
    %v1377 = vld [vmem:[%s1364 + $0x60] sm:$0xff]
    %v1378 = vld [vmem:[%s1364 + $0x68] sm:$0xff]
    %v1379 = vld [vmem:[%s1364 + $0x70] sm:$0xff]
    %v1380 = vld [vmem:[%s1364 + $0x78] sm:$0xff]
    %s1381 = scalar_lea.vmem %s2, 8
    %v1382 = vld [vmem:[%s1381] sm:$0x1]
    %v1384 = vlaneseq
    %v1385 = vshrl.u32 %v1384, 7
    %v1386 = vsub.s32 0, %v1385
    %v1387 = vrot.slane %v1382, %v1386
    %1389 = vmatprep.subr.mxu0 0.0
    %1390 = vmatpush1.msra.mxu0 %v1365
    %1391 = vmatprep.subr.mxu0 0.0
    %1392 = vmatpush1.msra.mxu0 %v1366
    %1393 = vmatprep.subr.mxu0 0.0
    %1394 = vmatpush1.msra.mxu0 %v1367
    %1395 = vmatprep.subr.mxu0 0.0
    %1396 = vmatpush1.msra.mxu0 %v1368
    %1397 = vmatprep.subr.mxu0 0.0
    %1398 = vmatpush1.msra.mxu0 %v1369
    %1399 = vmatprep.subr.mxu0 0.0
    %1400 = vmatpush1.msra.mxu0 %v1370
    %1401 = vmatprep.subr.mxu0 0.0
    %1402 = vmatpush1.msra.mxu0 %v1371
    %1403 = vmatprep.subr.mxu0 0.0
    %1404 = vmatpush1.msra.mxu0 %v1372
    %1405 = vmatprep.subr.mxu0 0.0
    %1406 = vmatpush1.msra.mxu0 %v1373
    %1407 = vmatprep.subr.mxu0 0.0
    %1408 = vmatpush1.msra.mxu0 %v1374
    %1409 = vmatprep.subr.mxu0 0.0
    %1410 = vmatpush1.msra.mxu0 %v1375
    %1411 = vmatprep.subr.mxu0 0.0
    %1412 = vmatpush1.msra.mxu0 %v1376
    %1413 = vmatprep.subr.mxu0 0.0
    %1414 = vmatpush1.msra.mxu0 %v1377
    %1415 = vmatprep.subr.mxu0 0.0
    %1416 = vmatpush1.msra.mxu0 %v1378
    %1417 = vmatprep.subr.mxu0 0.0
    %1418 = vmatpush1.msra.mxu0 %v1379
    %1419 = vmatprep.subr.mxu0 0.0
    %1420 = vmatpush1.msra.mxu0 %v1380
    %1421 = vmatprep.subr.mxu0 0.0
    %1422 = vmatpush1.msra.mxu0 0.0
    %1423 = vmatprep.subr.mxu0 0.0
    %1424 = vmatpush1.msra.mxu0 0.0
    %1425 = vmatprep.subr.mxu0 0.0
    %1426 = vmatpush1.msra.mxu0 0.0
    %1427 = vmatprep.subr.mxu0 0.0
    %1428 = vmatpush1.msra.mxu0 0.0
    %1429 = vmatprep.subr.mxu0 0.0
    %1430 = vmatpush1.msra.mxu0 0.0
    %1431 = vmatprep.subr.mxu0 0.0
    %1432 = vmatpush1.msra.mxu0 0.0
    %1433 = vmatprep.subr.mxu0 0.0
    %1434 = vmatpush1.msra.mxu0 0.0
    %1435 = vmatprep.subr.mxu0 0.0
    %1436 = vmatpush1.msra.mxu0 0.0
    %1437 = vmatprep.subr.mxu0 0.0
    %1438 = vmatpush1.msra.mxu0 0.0
    %1439 = vmatprep.subr.mxu0 0.0
    %1440 = vmatpush1.msra.mxu0 0.0
    %1441 = vmatprep.subr.mxu0 0.0
    %1442 = vmatpush1.msra.mxu0 0.0
    %1443 = vmatprep.subr.mxu0 0.0
    %1444 = vmatpush1.msra.mxu0 0.0
    %1445 = vmatprep.subr.mxu0 0.0
    %1446 = vmatpush1.msra.mxu0 0.0
    %1447 = vmatprep.subr.mxu0 0.0
    %1448 = vmatpush1.msra.mxu0 0.0
    %1449 = vmatprep.subr.mxu0 0.0
    %1450 = vmatpush1.msra.mxu0 0.0
    %1451 = vmatprep.subr.mxu0 0.0
    %1452 = vmatpush1.msra.mxu0 0.0
    %1453 = vmatprep.mubr.f32.mxu0 0.0
    %1454 = vmatmul.mubr.f32.gmra.mrb[0].mxu0 %v1292
    %v1455 = vpop.f32.mrb[0].mxu0
    %v1456 = vadd.f32 %v1387, %v1455
    %v1457 = vpop.f32.mrb[0].mxu0
    %1458 = vdwg.mxu0
    %v1459 = vtanh.pop %v1456
    %v1460 = vxor.u32 %v1459, 2147483648
    %v1461 = vmul.f32 %v1460, 1.442695
    %v1462 = vpow.pop %v1461
    %v1463 = vadd.f32 %v1462, 1.0
    %v1464 = vrcp.pop %v1463
    %v1465 = vmul.f32 1.0, %v1464
    %vm1466 = vcmask 64512
    %1467 = vst.msk [vmem:[%s3] sm:$0xff] %vm1466, %v1465
    %1468 = vmatprep.subr.mxu0 0.0
    %1469 = vmatpush1.msra.mxu0 %v1365
    %1470 = vmatprep.subr.mxu0 0.0
    %1471 = vmatpush1.msra.mxu0 %v1366
    %1472 = vmatprep.subr.mxu0 0.0
    %1473 = vmatpush1.msra.mxu0 %v1367
    %1474 = vmatprep.subr.mxu0 0.0
    %1475 = vmatpush1.msra.mxu0 %v1368
    %1476 = vmatprep.subr.mxu0 0.0
    %1477 = vmatpush1.msra.mxu0 %v1369
    %1478 = vmatprep.subr.mxu0 0.0
    %1479 = vmatpush1.msra.mxu0 %v1370
    %1480 = vmatprep.subr.mxu0 0.0
    %1481 = vmatpush1.msra.mxu0 %v1371
    %1482 = vmatprep.subr.mxu0 0.0
    %1483 = vmatpush1.msra.mxu0 %v1372
    %1484 = vmatprep.subr.mxu0 0.0
    %1485 = vmatpush1.msra.mxu0 %v1373
    %1486 = vmatprep.subr.mxu0 0.0
    %1487 = vmatpush1.msra.mxu0 %v1374
    %1488 = vmatprep.subr.mxu0 0.0
    %1489 = vmatpush1.msra.mxu0 %v1375
    %1490 = vmatprep.subr.mxu0 0.0
    %1491 = vmatpush1.msra.mxu0 %v1376
    %1492 = vmatprep.subr.mxu0 0.0
    %1493 = vmatpush1.msra.mxu0 %v1377
    %1494 = vmatprep.subr.mxu0 0.0
    %1495 = vmatpush1.msra.mxu0 %v1378
    %1496 = vmatprep.subr.mxu0 0.0
    %1497 = vmatpush1.msra.mxu0 %v1379
    %1498 = vmatprep.subr.mxu0 0.0
    %1499 = vmatpush1.msra.mxu0 %v1380
    %1500 = vmatprep.subr.mxu0 0.0
    %1501 = vmatpush1.msra.mxu0 0.0
    %1502 = vmatprep.subr.mxu0 0.0
    %1503 = vmatpush1.msra.mxu0 0.0
    %1504 = vmatprep.subr.mxu0 0.0
    %1505 = vmatpush1.msra.mxu0 0.0
    %1506 = vmatprep.subr.mxu0 0.0
    %1507 = vmatpush1.msra.mxu0 0.0
    %1508 = vmatprep.subr.mxu0 0.0
    %1509 = vmatpush1.msra.mxu0 0.0
    %1510 = vmatprep.subr.mxu0 0.0
    %1511 = vmatpush1.msra.mxu0 0.0
    %1512 = vmatprep.subr.mxu0 0.0
    %1513 = vmatpush1.msra.mxu0 0.0
    %1514 = vmatprep.subr.mxu0 0.0
    %1515 = vmatpush1.msra.mxu0 0.0
    %1516 = vmatprep.subr.mxu0 0.0
    %1517 = vmatpush1.msra.mxu0 0.0
    %1518 = vmatprep.subr.mxu0 0.0
    %1519 = vmatpush1.msra.mxu0 0.0
    %1520 = vmatprep.subr.mxu0 0.0
    %1521 = vmatpush1.msra.mxu0 0.0
    %1522 = vmatprep.subr.mxu0 0.0
    %1523 = vmatpush1.msra.mxu0 0.0
    %1524 = vmatprep.subr.mxu0 0.0
    %1525 = vmatpush1.msra.mxu0 0.0
    %1526 = vmatprep.subr.mxu0 0.0
    %1527 = vmatpush1.msra.mxu0 0.0
    %1528 = vmatprep.subr.mxu0 0.0
    %1529 = vmatpush1.msra.mxu0 0.0
    %1530 = vmatprep.subr.mxu0 0.0
    %1531 = vmatpush1.msra.mxu0 0.0
    %1532 = vmatprep.mubr.f32.mxu0 0.0
    %1533 = vmatmul.mubr.f32.gmra.mrb[0].mxu0 %v1363
    %v1534 = vpop.f32.mrb[0].mxu0
    %v1535 = vadd.f32 %v1387, %v1534
    %v1536 = vpop.f32.mrb[0].mxu0
    %1537 = vdwg.mxu0
    %v1538 = vtanh.pop %v1535
    %v1539 = vxor.u32 %v1538, 2147483648
    %v1540 = vmul.f32 %v1539, 1.442695
    %v1541 = vpow.pop %v1540
    %v1542 = vadd.f32 %v1541, 1.0
    %v1543 = vrcp.pop %v1542
    %v1544 = vmul.f32 1.0, %v1543
    %1545 = vst.msk [vmem:[%s3 + $0x8] sm:$0xff] %vm1466, %v1544
    // Predicated region
    $region18: #{banknn_forward.1} parent=1 // pred_check
      _
    $region19: #{banknn_forward.1} parent=1 // pred_check_branch
      %1547 = sbr.rel (0) target = $region21
    $region20: #{banknn_forward.1} parent=1 // pred_region
      _
    $region21: #{banknn_forward.1} parent=1 // pred_fallthru
      _
    // Predicated region
    $region22: #{banknn_forward.1} parent=1 // pred_check
      _
    $region23: #{banknn_forward.1} parent=1 // pred_check_branch
      %1549 = sbr.rel (0) target = $region25
    $region24: #{banknn_forward.1} parent=1 // pred_region
      _
    $region25: #{banknn_forward.1} parent=1 // pred_fallthru
      _
    %1550 = vsyncpa [#allocation3], 1

</llo_original>
